<compile_context>
chip_gen: v6e
topology: v6e:2x2x1
jax: 0.10.0
libtpu: 0.0.40
codegen_flags: <defaults>
</compile_context>

<pallas_src>
import math

import numpy as np
import jax
import jax.numpy as jnp
from jax.experimental import pallas as pl
from jax.experimental.pallas import tpu as pltpu

VMEM_SPEC = pl.BlockSpec(memory_space=pltpu.MemorySpace.VMEM)

# ----------------------------- static configuration -----------------------------
QK_DIM = 32
BS = 2
S_SHAPES = [(BS, 4, 16, 16), (BS, 8, 16, 16), (BS, 8, 16, 16)]   # student features
T_SHAPES = [(BS, 8, 8, 8), (BS, 16, 16, 16)]                     # teacher features
UNIQUE_T_SHAPES = [(BS, 8, 8, 8), (BS, 16, 16, 16)]              # one Sample per shape
N_T = [0, 1]                                                     # teacher i -> sampler N_T[i]
OUT_LANES = 128                                                  # lane-dense loss slab

S_NUM, T_NUM = len(S_SHAPES), len(T_SHAPES)
N_MAPS = S_NUM + T_NUM
C_LIST = [sh[1] for sh in S_SHAPES] + [sh[1] for sh in T_SHAPES]
HW_LIST = [sh[2] * sh[3] for sh in S_SHAPES] + [sh[2] * sh[3] for sh in T_SHAPES]
C_OFF = [0]
for _c in C_LIST:
    C_OFF.append(C_OFF[-1] + _c)
C_TOTAL = C_OFF[-1]                                              # 44

S_SPATIAL = (S_SHAPES[0][2], S_SHAPES[0][3])
assert all((sh[2], sh[3]) == S_SPATIAL for sh in S_SHAPES), "students must share spatial size"
HW_S = S_SPATIAL[0] * S_SPATIAL[1]                               # 256
T_HW = [sh[2] * sh[3] for sh in T_SHAPES]
UNIQ_HW = [sh[2] * sh[3] for sh in UNIQUE_T_SHAPES]
assert all(T_HW[i] == UNIQ_HW[n] for i, n in enumerate(N_T))

BN_EPS = 1e-5                                                    # BatchNorm1d default
NORM_EPS = 1e-12                                                 # F.normalize default

# -- packed parameter-slab row layout (one lane-dense (SLAB_ROWS, 160) f32 slab) --
LIN_COLS = N_MAPS * QK_DIM        # 160 : one QK-wide column block per feature map
ROW_BCM = C_TOTAL                 # 44  : channel-Linear biases
ROW_GCM = ROW_BCM + 1             # 45  : channel-BN gamma
ROW_BECM = ROW_BCM + 2            # 46  : channel-BN beta
ROW_WBL = ROW_BCM + 3             # 47  : bilinear weight (QK rows, T*QK lanes)
ROW_BBL = ROW_WBL + QK_DIM        # 79  : bilinear bias
ROW_GBL = ROW_BBL + 1             # 80  : bilinear-BN gamma
ROW_BEBL = ROW_BBL + 2            # 81  : bilinear-BN beta
ROW_PT = ROW_BBL + 3              # 82  : p_t rows
ROW_PS = ROW_PT + T_NUM           # 84  : p_s rows
SLAB_ROWS = -(-(ROW_PS + S_NUM) // 8) * 8                        # 88


def _pooling_matrix(src_hw, dst_hw):
    """AdaptiveAvgPool2d(src->dst) with integer ratios as a (src_hw, dst_h*dst_w) matmul."""
    (sH, sW), (tH, tW) = src_hw, dst_hw
    # TODO(synk): non-integer AdaptiveAvgPool2d down-sampling ratios not implemented.
    assert sH % tH == 0 and sW % tW == 0
    kh, kw = sH // tH, sW // tW
    P = np.zeros((sH * sW, tH * tW), np.float32)
    for th in range(tH):
        for tw in range(tW):
            for dh in range(kh):
                for dw in range(kw):
                    P[(th * kh + dh) * sW + (tw * kw + dw), th * tW + tw] = 1.0 / (kh * kw)
    return jnp.asarray(P)


POOL_MATS, POOL_IDX = [], []
for (_, _, _tH, _tW) in UNIQUE_T_SHAPES:
    if (_tH, _tW) == S_SPATIAL:
        POOL_IDX.append(-1)                                      # identity pooling
    else:
        POOL_IDX.append(len(POOL_MATS))
        POOL_MATS.append(_pooling_matrix(S_SPATIAL, (_tH, _tW)))
N_POOL = len(POOL_MATS)


# ------------------------------ fused Pallas kernel ------------------------------

def _afd_fused_kernel(*refs):
    feat_refs = refs[:N_MAPS]
    slab_ref = refs[N_MAPS]
    pool_refs = refs[N_MAPS + 1:N_MAPS + 1 + N_POOL]
    out_ref = refs[N_MAPS + 1 + N_POOL]
    ch_sc, key_sc, val_sc = refs[N_MAPS + 2 + N_POOL:]

    S, T, QK = S_NUM, T_NUM, QK_DIM
    B = feat_refs[0].shape[0]

    # ---- streamed per-map reductions (static unroll keeps the live set tiny) ----
    t_vals = []
    for j, fr in enumerate(feat_refs):
        x = fr[...]                                              # (B, C_j, HW_j)
        # channel sum; the 1/HW of .mean(3).mean(2) is folded into the packed weights
        ch_sc[:, C_OFF[j]:C_OFF[j + 1]] = jnp.sum(x, axis=2)     # (B, C_j)
        sp = jnp.mean(x * x, axis=1)                             # (B, HW_j) = mean_c(x^2)
        if j < S:
            val_sc[j * B:(j + 1) * B, :] = sp                    # student value rows (s, b)
        else:
            t_vals.append(sp)                                    # teacher values

    # ---- five Linear+BatchNorm1d layers: ONE block-diagonal matmul + column BN ----
    y = jnp.dot(ch_sc[...], slab_ref[0:C_TOTAL, :],
                preferred_element_type=jnp.float32)              # (B, 5*QK)
    y = y + slab_ref[ROW_BCM:ROW_BCM + 1, :]
    mu = jnp.mean(y, axis=0, keepdims=True)                      # training-mode batch stats
    var = jnp.mean((y - mu) * (y - mu), axis=0, keepdims=True)   # biased variance
    y = ((y - mu) * jax.lax.rsqrt(var + BN_EPS)
         * slab_ref[ROW_GCM:ROW_GCM + 1, :] + slab_ref[ROW_BECM:ROW_BECM + 1, :])

    key = jnp.maximum(y[:, :S * QK], 0.0)                        # key layers: relu=True
    query = y[:, S * QK:]                                        # query layers: relu=False

    # pack key rows as (s, b) so the bilinear is a single 2-D (S*B, QK) matmul
    for s in range(S):
        key_sc[s * B:(s + 1) * B, :] = key[:, s * QK:(s + 1) * QK]

    # ---- bilinear Linear(QK -> T*QK) + BatchNorm over all S*B rows (relu=False) ----
    yb = jnp.dot(key_sc[...], slab_ref[ROW_WBL:ROW_WBL + QK, :T * QK],
                 preferred_element_type=jnp.float32)             # (S*B, T*QK)
    yb = yb + slab_ref[ROW_BBL:ROW_BBL + 1, :T * QK]
    mu_b = jnp.mean(yb, axis=0, keepdims=True)
    var_b = jnp.mean((yb - mu_b) * (yb - mu_b), axis=0, keepdims=True)
    yb = ((yb - mu_b) * jax.lax.rsqrt(var_b + BN_EPS)
          * slab_ref[ROW_GBL:ROW_GBL + 1, :T * QK]
          + slab_ref[ROW_BEBL:ROW_BEBL + 1, :T * QK])
    # yb[s*B + b, t*QK + q] == bilinear_key[b, s, t, q]

    # ---- (p_t @ p_s.T) attention bias, hoisted out of the per-teacher loop ----
    p_t = slab_ref[ROW_PT:ROW_PT + T, :QK]                       # (T, QK)
    p_s = slab_ref[ROW_PS:ROW_PS + S, :QK]                       # (S, QK)
    p_log = jnp.sum(p_t[:, None, :] * p_s[None, :, :], axis=2)   # (T, S)

    # ---- AdaptiveAvgPool2d(mean_c(x^2)) for all students at once + F.normalize ----
    sp_s = val_sc[...]                                           # (S*B, HW_S), rows (s, b)
    values = []
    for u in range(len(UNIQ_HW)):
        if POOL_IDX[u] < 0:
            v = sp_s                                             # target size == student size
        else:
            v = jnp.dot(sp_s, pool_refs[POOL_IDX[u]][...],
                        preferred_element_type=jnp.float32)      # (S*B, hw_u)
        nrm = jnp.maximum(jnp.sqrt(jnp.sum(v * v, axis=1, keepdims=True)), NORM_EPS)
        values.append(v / nrm)

    # ---- per-teacher softmax attention over students + weighted value loss ----
    inv_sqrt_qk = 1.0 / math.sqrt(QK)
    lane_id = jax.lax.broadcasted_iota(jnp.int32, (1, OUT_LANES), 1)
    acc = jnp.zeros((1, OUT_LANES), jnp.float32)
    for ti in range(T):
        yb_t = yb[:, ti * QK:(ti + 1) * QK]                      # (S*B, QK)
        q_t = query[:, ti * QK:(ti + 1) * QK]                    # (B, QK)
        v_t = t_vals[ti]                                         # (B, hw)
        v_t = v_t / jnp.maximum(jnp.sqrt(jnp.sum(v_t * v_t, axis=1, keepdims=True)), NORM_EPS)
        v_s = values[N_T[ti]]                                    # (S*B, hw)

        # per-student logits / diffs as (B, 1) columns; softmax over students is done
        # with explicit max / exp / sum of the S columns (no cross-layout reshapes).
        logits, diffs = [], []
        for s in range(S):
            l = jnp.sum(yb_t[s * B:(s + 1) * B, :] * q_t, axis=1, keepdims=True)   # (B, 1)
            # PyTorch: (einsum + p_logit) / sqrt(qk) -- the bias is scaled as well.
            logits.append((l + p_log[ti:ti + 1, s:s + 1]) * inv_sqrt_qk)
            d = v_s[s * B:(s + 1) * B, :] - v_t
            diffs.append(jnp.mean(d * d, axis=1, keepdims=True))                   # (B, 1)

        m = logits[0]
        for s in range(1, S):
            m = jnp.maximum(m, logits[s])
        exps = [jnp.exp(l - m) for l in logits]
        denom = exps[0]
        num = diffs[0] * exps[0]
        for s in range(1, S):
            denom = denom + exps[s]
            num = num + diffs[s] * exps[s]
        # sum_s(att*diff) then mean over the batch
        loss_i = jnp.sum(num / denom, axis=0, keepdims=True) * (1.0 / B)            # (1, 1)
        acc = acc + jnp.where(lane_id == ti, loss_i, 0.0)        # scatter into lane ti

    out_ref[...] = acc


# ------------------------------ parameters ------------------------------

def init_params(key):
    """Per-layer parameters with PyTorch default inits (Linear uniform, BN 1/0, xavier p_*)."""
    keys = jax.random.split(key, 2 * N_MAPS + 4)
    w_cm, b_cm = [], []
    for j, c in enumerate(C_LIST):
        bound = 1.0 / math.sqrt(c)                               # PyTorch Linear default init
        w_cm.append(jax.random.uniform(keys[2 * j], (c, QK_DIM), jnp.float32, -bound, bound))
        b_cm.append(jax.random.uniform(keys[2 * j + 1], (QK_DIM,), jnp.float32, -bound, bound))
    k_bw, k_bb, k_pt, k_ps = keys[-4:]
    bound = 1.0 / math.sqrt(QK_DIM)
    tq = QK_DIM * T_NUM
    return dict(
        w_cm=w_cm, b_cm=b_cm,
        g_cm=[jnp.ones((QK_DIM,), jnp.float32) for _ in range(N_MAPS)],
        be_cm=[jnp.zeros((QK_DIM,), jnp.float32) for _ in range(N_MAPS)],
        w_bl=jax.random.uniform(k_bw, (QK_DIM, tq), jnp.float32, -bound, bound),
        b_bl=jax.random.uniform(k_bb, (tq,), jnp.float32, -bound, bound),
        g_bl=jnp.ones((tq,), jnp.float32),
        be_bl=jnp.zeros((tq,), jnp.float32),
        # xavier_normal_: std = sqrt(2 / (fan_in + fan_out))
        p_t=math.sqrt(2.0 / (T_NUM + QK_DIM)) * jax.random.normal(k_pt, (T_NUM, QK_DIM), jnp.float32),
        p_s=math.sqrt(2.0 / (S_NUM + QK_DIM)) * jax.random.normal(k_ps, (S_NUM, QK_DIM), jnp.float32),
    )


def pack_params(params):
    """One-time packing of every tiny parameter into a single lane-dense f32 slab.
    The five channel-Linear weights become one block-diagonal matrix with the 1/HW
    channel-mean normalisation folded in (done once here, not per forward call)."""
    slab = np.zeros((SLAB_ROWS, LIN_COLS), np.float32)
    for j in range(N_MAPS):
        c0, c1 = C_OFF[j], C_OFF[j + 1]
        l0, l1 = j * QK_DIM, (j + 1) * QK_DIM
        slab[c0:c1, l0:l1] = np.asarray(params["w_cm"][j]) / float(HW_LIST[j])
        slab[ROW_BCM, l0:l1] = np.asarray(params["b_cm"][j])
        slab[ROW_GCM, l0:l1] = np.asarray(params["g_cm"][j])
        slab[ROW_BECM, l0:l1] = np.asarray(params["be_cm"][j])
    tq = QK_DIM * T_NUM
    slab[ROW_WBL:ROW_WBL + QK_DIM, :tq] = np.asarray(params["w_bl"])
    slab[ROW_BBL, :tq] = np.asarray(params["b_bl"])
    slab[ROW_GBL, :tq] = np.asarray(params["g_bl"])
    slab[ROW_BEBL, :tq] = np.asarray(params["be_bl"])
    slab[ROW_PT:ROW_PT + T_NUM, :QK_DIM] = np.asarray(params["p_t"])
    slab[ROW_PS:ROW_PS + S_NUM, :QK_DIM] = np.asarray(params["p_s"])
    return jnp.asarray(slab)


# ------------------------------ forward ------------------------------

@jax.jit
def attention_forward(param_slab, g_s, g_t):
    # Only a free, contiguous reshape to (B, C, H*W) in front of the kernel; no pad/stack.
    feats = [f.reshape(f.shape[0], f.shape[1], -1) for f in (list(g_s) + list(g_t))]
    out = pl.pallas_call(
        _afd_fused_kernel,
        out_shape=jax.ShapeDtypeStruct((1, OUT_LANES), jnp.float32),
        in_specs=[VMEM_SPEC] * (N_MAPS + 1 + N_POOL),
        out_specs=VMEM_SPEC,
        scratch_shapes=[
            pltpu.VMEM((BS, C_TOTAL), jnp.float32),              # packed channel sums
            pltpu.VMEM((S_NUM * BS, QK_DIM), jnp.float32),       # packed key rows (s, b)
            pltpu.VMEM((S_NUM * BS, HW_S), jnp.float32),         # packed student values (s, b)
        ],
    )(*feats, param_slab, *POOL_MATS)
    return [out[0, i] for i in range(T_NUM)]


if __name__ == "__main__":
    root = jax.random.PRNGKey(0)
    k_params, k_s, k_t = jax.random.split(root, 3)
    param_slab = pack_params(init_params(k_params))

    s_keys = jax.random.split(k_s, len(S_SHAPES))
    t_keys = jax.random.split(k_t, len(T_SHAPES))
    g_s = [jax.random.normal(k, shp, jnp.float32) for k, shp in zip(s_keys, S_SHAPES)]
    g_t = [jax.random.normal(k, shp, jnp.float32) for k, shp in zip(t_keys, T_SHAPES)]

    losses = attention_forward(param_slab, g_s, g_t)
    jax.block_until_ready(losses)
    print("KERNEL_OK")
</pallas_src>

<mosaic_0001>
module attributes {stable_mosaic.version = 11 : i64} {
  func.func @_afd_fused_kernel(%arg0: memref<2x4x256xf32, #tpu.memory_space<vmem>>, %arg1: memref<2x8x256xf32, #tpu.memory_space<vmem>>, %arg2: memref<2x8x256xf32, #tpu.memory_space<vmem>>, %arg3: memref<2x8x64xf32, #tpu.memory_space<vmem>>, %arg4: memref<2x16x256xf32, #tpu.memory_space<vmem>>, %arg5: memref<88x160xf32, #tpu.memory_space<vmem>>, %arg6: memref<256x64xf32, #tpu.memory_space<vmem>>, %arg7: memref<1x128xf32, #tpu.memory_space<vmem>>, %arg8: memref<2x44xf32, #tpu.memory_space<vmem>>, %arg9: memref<6x32xf32, #tpu.memory_space<vmem>>, %arg10: memref<6x256xf32, #tpu.memory_space<vmem>>) attributes {dimension_semantics = [], scalar_prefetch = 0 : i64, scratch_operands = 3 : i64, tpu.core_type = #tpu.core_type<tc>} {
    %c0 = arith.constant 0 : index
    %c0_0 = arith.constant 0 : index
    %c0_1 = arith.constant 0 : index
    %0 = vector.load %arg0[%c0, %c0_0, %c0_1] : memref<2x4x256xf32, #tpu.memory_space<vmem>>, vector<2x4x256xf32>
    %cst = arith.constant dense<0.000000e+00> : vector<2x4xf32>
    %1 = vector.multi_reduction <add>, %0, %cst [2] : vector<2x4x256xf32> to vector<2x4xf32>
    %c0_2 = arith.constant 0 : index
    %c0_3 = arith.constant 0 : index
    %2 = vector.load %arg8[%c0_2, %c0_3] : memref<2x44xf32, #tpu.memory_space<vmem>>, vector<2x4xf32>
    tpu.vector_store %arg8[%c0_2, %c0_3], %1 {strides = array<i32>} : memref<2x44xf32, #tpu.memory_space<vmem>>, vector<2x4xf32>,
    %3 = arith.mulf %0, %0 : vector<2x4x256xf32>
    %cst_4 = arith.constant dense<0.000000e+00> : vector<2x256xf32>
    %4 = vector.multi_reduction <add>, %3, %cst_4 [1] : vector<2x4x256xf32> to vector<2x256xf32>
    %cst_5 = arith.constant 4.000000e+00 : f32
    %5 = vector.broadcast %cst_5 : f32 to vector<2x256xf32>
    %6 = arith.divf %4, %5 : vector<2x256xf32>
    %c0_6 = arith.constant 0 : index
    %c0_7 = arith.constant 0 : index
    %7 = vector.load %arg10[%c0_6, %c0_7] : memref<6x256xf32, #tpu.memory_space<vmem>>, vector<2x256xf32>
    tpu.vector_store %arg10[%c0_6, %c0_7], %6 {strides = array<i32>} : memref<6x256xf32, #tpu.memory_space<vmem>>, vector<2x256xf32>,
    %c0_8 = arith.constant 0 : index
    %c0_9 = arith.constant 0 : index
    %c0_10 = arith.constant 0 : index
    %8 = vector.load %arg1[%c0_8, %c0_9, %c0_10] : memref<2x8x256xf32, #tpu.memory_space<vmem>>, vector<2x8x256xf32>
    %cst_11 = arith.constant dense<0.000000e+00> : vector<2x8xf32>
    %9 = vector.multi_reduction <add>, %8, %cst_11 [2] : vector<2x8x256xf32> to vector<2x8xf32>
    %c0_12 = arith.constant 0 : index
    %c4 = arith.constant 4 : index
    %10 = vector.load %arg8[%c0_12, %c4] : memref<2x44xf32, #tpu.memory_space<vmem>>, vector<2x8xf32>
    tpu.vector_store %arg8[%c0_12, %c4], %9 {strides = array<i32>} : memref<2x44xf32, #tpu.memory_space<vmem>>, vector<2x8xf32>,
    %11 = arith.mulf %8, %8 : vector<2x8x256xf32>
    %cst_13 = arith.constant dense<0.000000e+00> : vector<2x256xf32>
    %12 = vector.multi_reduction <add>, %11, %cst_13 [1] : vector<2x8x256xf32> to vector<2x256xf32>
    %cst_14 = arith.constant 8.000000e+00 : f32
    %13 = vector.broadcast %cst_14 : f32 to vector<2x256xf32>
    %14 = arith.divf %12, %13 : vector<2x256xf32>
    %c2 = arith.constant 2 : index
    %c0_15 = arith.constant 0 : index
    %15 = vector.load %arg10[%c2, %c0_15] : memref<6x256xf32, #tpu.memory_space<vmem>>, vector<2x256xf32>
    tpu.vector_store %arg10[%c2, %c0_15], %14 {strides = array<i32>} : memref<6x256xf32, #tpu.memory_space<vmem>>, vector<2x256xf32>,
    %c0_16 = arith.constant 0 : index
    %c0_17 = arith.constant 0 : index
    %c0_18 = arith.constant 0 : index
    %16 = vector.load %arg2[%c0_16, %c0_17, %c0_18] : memref<2x8x256xf32, #tpu.memory_space<vmem>>, vector<2x8x256xf32>
    %cst_19 = arith.constant dense<0.000000e+00> : vector<2x8xf32>
    %17 = vector.multi_reduction <add>, %16, %cst_19 [2] : vector<2x8x256xf32> to vector<2x8xf32>
    %c0_20 = arith.constant 0 : index
    %c12 = arith.constant 12 : index
    %18 = vector.load %arg8[%c0_20, %c12] : memref<2x44xf32, #tpu.memory_space<vmem>>, vector<2x8xf32>
    tpu.vector_store %arg8[%c0_20, %c12], %17 {strides = array<i32>} : memref<2x44xf32, #tpu.memory_space<vmem>>, vector<2x8xf32>,
    %19 = arith.mulf %16, %16 : vector<2x8x256xf32>
    %cst_21 = arith.constant dense<0.000000e+00> : vector<2x256xf32>
    %20 = vector.multi_reduction <add>, %19, %cst_21 [1] : vector<2x8x256xf32> to vector<2x256xf32>
    %cst_22 = arith.constant 8.000000e+00 : f32
    %21 = vector.broadcast %cst_22 : f32 to vector<2x256xf32>
    %22 = arith.divf %20, %21 : vector<2x256xf32>
    %c4_23 = arith.constant 4 : index
    %c0_24 = arith.constant 0 : index
    %23 = vector.load %arg10[%c4_23, %c0_24] : memref<6x256xf32, #tpu.memory_space<vmem>>, vector<2x256xf32>
    tpu.vector_store %arg10[%c4_23, %c0_24], %22 {strides = array<i32>} : memref<6x256xf32, #tpu.memory_space<vmem>>, vector<2x256xf32>,
    %c0_25 = arith.constant 0 : index
    %c0_26 = arith.constant 0 : index
    %c0_27 = arith.constant 0 : index
    %24 = vector.load %arg3[%c0_25, %c0_26, %c0_27] : memref<2x8x64xf32, #tpu.memory_space<vmem>>, vector<2x8x64xf32>
    %cst_28 = arith.constant dense<0.000000e+00> : vector<2x8xf32>
    %25 = vector.multi_reduction <add>, %24, %cst_28 [2] : vector<2x8x64xf32> to vector<2x8xf32>
    %c0_29 = arith.constant 0 : index
    %c20 = arith.constant 20 : index
    %26 = vector.load %arg8[%c0_29, %c20] : memref<2x44xf32, #tpu.memory_space<vmem>>, vector<2x8xf32>
    tpu.vector_store %arg8[%c0_29, %c20], %25 {strides = array<i32>} : memref<2x44xf32, #tpu.memory_space<vmem>>, vector<2x8xf32>,
    %27 = arith.mulf %24, %24 : vector<2x8x64xf32>
    %cst_30 = arith.constant dense<0.000000e+00> : vector<2x64xf32>
    %28 = vector.multi_reduction <add>, %27, %cst_30 [1] : vector<2x8x64xf32> to vector<2x64xf32>
    %cst_31 = arith.constant 8.000000e+00 : f32
    %29 = vector.broadcast %cst_31 : f32 to vector<2x64xf32>
    %30 = arith.divf %28, %29 : vector<2x64xf32>
    %c0_32 = arith.constant 0 : index
    %c0_33 = arith.constant 0 : index
    %c0_34 = arith.constant 0 : index
    %31 = vector.load %arg4[%c0_32, %c0_33, %c0_34] : memref<2x16x256xf32, #tpu.memory_space<vmem>>, vector<2x16x256xf32>
    %cst_35 = arith.constant dense<0.000000e+00> : vector<2x16xf32>
    %32 = vector.multi_reduction <add>, %31, %cst_35 [2] : vector<2x16x256xf32> to vector<2x16xf32>
    %c0_36 = arith.constant 0 : index
    %c28 = arith.constant 28 : index
    %33 = vector.load %arg8[%c0_36, %c28] : memref<2x44xf32, #tpu.memory_space<vmem>>, vector<2x16xf32>
    tpu.vector_store %arg8[%c0_36, %c28], %32 {strides = array<i32>} : memref<2x44xf32, #tpu.memory_space<vmem>>, vector<2x16xf32>,
    %34 = arith.mulf %31, %31 : vector<2x16x256xf32>
    %cst_37 = arith.constant dense<0.000000e+00> : vector<2x256xf32>
    %35 = vector.multi_reduction <add>, %34, %cst_37 [1] : vector<2x16x256xf32> to vector<2x256xf32>
    %cst_38 = arith.constant 1.600000e+01 : f32
    %36 = vector.broadcast %cst_38 : f32 to vector<2x256xf32>
    %37 = arith.divf %35, %36 : vector<2x256xf32>
    %c0_39 = arith.constant 0 : index
    %c0_40 = arith.constant 0 : index
    %38 = vector.load %arg8[%c0_39, %c0_40] : memref<2x44xf32, #tpu.memory_space<vmem>>, vector<2x44xf32>
    %c0_41 = arith.constant 0 : index
    %c0_42 = arith.constant 0 : index
    %39 = vector.load %arg5[%c0_41, %c0_42] : memref<88x160xf32, #tpu.memory_space<vmem>>, vector<44x160xf32>
    %cst_43 = arith.constant dense<0.000000e+00> : vector<2x160xf32>
    %40 = tpu.matmul %38, %39, %cst_43 {dimension_numbers = #tpu.dot_dimension_numbers<[1], [0], [0], [1], [0, 0, 1, 1], [], []>} : vector<2x44xf32>, vector<44x160xf32>, vector<2x160xf32> -> vector<2x160xf32>
    %c44 = arith.constant 44 : index
    %c0_44 = arith.constant 0 : index
    %41 = vector.load %arg5[%c44, %c0_44] : memref<88x160xf32, #tpu.memory_space<vmem>>, vector<1x160xf32>
    %42 = vector.broadcast %41 : vector<1x160xf32> to vector<2x160xf32>
    %43 = arith.addf %40, %42 : vector<2x160xf32>
    %cst_45 = arith.constant dense<0.000000e+00> : vector<160xf32>
    %44 = vector.multi_reduction <add>, %43, %cst_45 [0] : vector<2x160xf32> to vector<160xf32>
    %45 = vector.shape_cast %44 : vector<160xf32> to vector<1x160xf32>
    %cst_46 = arith.constant 2.000000e+00 : f32
    %46 = vector.broadcast %cst_46 : f32 to vector<1x160xf32>
    %47 = arith.divf %45, %46 : vector<1x160xf32>
    %48 = vector.broadcast %47 : vector<1x160xf32> to vector<2x160xf32>
    %49 = arith.subf %43, %48 : vector<2x160xf32>
    %50 = vector.broadcast %47 : vector<1x160xf32> to vector<2x160xf32>
    %51 = arith.subf %43, %50 : vector<2x160xf32>
    %52 = arith.mulf %49, %51 : vector<2x160xf32>
    %cst_47 = arith.constant dense<0.000000e+00> : vector<160xf32>
    %53 = vector.multi_reduction <add>, %52, %cst_47 [0] : vector<2x160xf32> to vector<160xf32>
    %54 = vector.shape_cast %53 : vector<160xf32> to vector<1x160xf32>
    %cst_48 = arith.constant 2.000000e+00 : f32
    %55 = vector.broadcast %cst_48 : f32 to vector<1x160xf32>
    %56 = arith.divf %54, %55 : vector<1x160xf32>
    %57 = vector.broadcast %47 : vector<1x160xf32> to vector<2x160xf32>
    %58 = arith.subf %43, %57 : vector<2x160xf32>
    %cst_49 = arith.constant 9.99999974E-6 : f32
    %59 = vector.broadcast %cst_49 : f32 to vector<1x160xf32>
    %60 = arith.addf %56, %59 : vector<1x160xf32>
    %61 = math.rsqrt %60 : vector<1x160xf32>
    %62 = vector.broadcast %61 : vector<1x160xf32> to vector<2x160xf32>
    %63 = arith.mulf %58, %62 : vector<2x160xf32>
    %c45 = arith.constant 45 : index
    %c0_50 = arith.constant 0 : index
    %64 = vector.load %arg5[%c45, %c0_50] : memref<88x160xf32, #tpu.memory_space<vmem>>, vector<1x160xf32>
    %65 = vector.broadcast %64 : vector<1x160xf32> to vector<2x160xf32>
    %66 = arith.mulf %63, %65 : vector<2x160xf32>
    %c46 = arith.constant 46 : index
    %c0_51 = arith.constant 0 : index
    %67 = vector.load %arg5[%c46, %c0_51] : memref<88x160xf32, #tpu.memory_space<vmem>>, vector<1x160xf32>
    %68 = vector.broadcast %67 : vector<1x160xf32> to vector<2x160xf32>
    %69 = arith.addf %66, %68 : vector<2x160xf32>
    %70 = vector.extract_strided_slice %69 {offsets = [0, 0], sizes = [2, 96], strides = [1, 1]} : vector<2x160xf32> to vector<2x96xf32>
    %cst_52 = arith.constant 0.000000e+00 : f32
    %71 = vector.broadcast %cst_52 : f32 to vector<2x96xf32>
    %72 = arith.maximumf %70, %71 : vector<2x96xf32>
    %73 = vector.extract_strided_slice %69 {offsets = [0, 96], sizes = [2, 64], strides = [1, 1]} : vector<2x160xf32> to vector<2x64xf32>
    %74 = vector.extract_strided_slice %72 {offsets = [0, 0], sizes = [2, 32], strides = [1, 1]} : vector<2x96xf32> to vector<2x32xf32>
    %c0_53 = arith.constant 0 : index
    %c0_54 = arith.constant 0 : index
    %75 = vector.load %arg9[%c0_53, %c0_54] : memref<6x32xf32, #tpu.memory_space<vmem>>, vector<2x32xf32>
    tpu.vector_store %arg9[%c0_53, %c0_54], %74 {strides = array<i32>} : memref<6x32xf32, #tpu.memory_space<vmem>>, vector<2x32xf32>,
    %76 = vector.extract_strided_slice %72 {offsets = [0, 32], sizes = [2, 32], strides = [1, 1]} : vector<2x96xf32> to vector<2x32xf32>
    %c2_55 = arith.constant 2 : index
    %c0_56 = arith.constant 0 : index
    %77 = vector.load %arg9[%c2_55, %c0_56] : memref<6x32xf32, #tpu.memory_space<vmem>>, vector<2x32xf32>
    tpu.vector_store %arg9[%c2_55, %c0_56], %76 {strides = array<i32>} : memref<6x32xf32, #tpu.memory_space<vmem>>, vector<2x32xf32>,
    %78 = vector.extract_strided_slice %72 {offsets = [0, 64], sizes = [2, 32], strides = [1, 1]} : vector<2x96xf32> to vector<2x32xf32>
    %c4_57 = arith.constant 4 : index
    %c0_58 = arith.constant 0 : index
    %79 = vector.load %arg9[%c4_57, %c0_58] : memref<6x32xf32, #tpu.memory_space<vmem>>, vector<2x32xf32>
    tpu.vector_store %arg9[%c4_57, %c0_58], %78 {strides = array<i32>} : memref<6x32xf32, #tpu.memory_space<vmem>>, vector<2x32xf32>,
    %c0_59 = arith.constant 0 : index
    %c0_60 = arith.constant 0 : index
    %80 = vector.load %arg9[%c0_59, %c0_60] : memref<6x32xf32, #tpu.memory_space<vmem>>, vector<6x32xf32>
    %c47 = arith.constant 47 : index
    %c0_61 = arith.constant 0 : index
    %81 = vector.load %arg5[%c47, %c0_61] : memref<88x160xf32, #tpu.memory_space<vmem>>, vector<32x64xf32>
    %cst_62 = arith.constant dense<0.000000e+00> : vector<6x64xf32>
    %82 = tpu.matmul %80, %81, %cst_62 {dimension_numbers = #tpu.dot_dimension_numbers<[1], [0], [0], [1], [0, 0, 1, 1], [], []>} : vector<6x32xf32>, vector<32x64xf32>, vector<6x64xf32> -> vector<6x64xf32>
    %c79 = arith.constant 79 : index
    %c0_63 = arith.constant 0 : index
    %83 = vector.load %arg5[%c79, %c0_63] : memref<88x160xf32, #tpu.memory_space<vmem>>, vector<1x64xf32>
    %84 = vector.broadcast %83 : vector<1x64xf32> to vector<6x64xf32>
    %85 = arith.addf %82, %84 : vector<6x64xf32>
    %cst_64 = arith.constant dense<0.000000e+00> : vector<64xf32>
    %86 = vector.multi_reduction <add>, %85, %cst_64 [0] : vector<6x64xf32> to vector<64xf32>
    %87 = vector.shape_cast %86 : vector<64xf32> to vector<1x64xf32>
    %cst_65 = arith.constant 6.000000e+00 : f32
    %88 = vector.broadcast %cst_65 : f32 to vector<1x64xf32>
    %89 = arith.divf %87, %88 : vector<1x64xf32>
    %90 = vector.broadcast %89 : vector<1x64xf32> to vector<6x64xf32>
    %91 = arith.subf %85, %90 : vector<6x64xf32>
    %92 = vector.broadcast %89 : vector<1x64xf32> to vector<6x64xf32>
    %93 = arith.subf %85, %92 : vector<6x64xf32>
    %94 = arith.mulf %91, %93 : vector<6x64xf32>
    %cst_66 = arith.constant dense<0.000000e+00> : vector<64xf32>
    %95 = vector.multi_reduction <add>, %94, %cst_66 [0] : vector<6x64xf32> to vector<64xf32>
    %96 = vector.shape_cast %95 : vector<64xf32> to vector<1x64xf32>
    %cst_67 = arith.constant 6.000000e+00 : f32
    %97 = vector.broadcast %cst_67 : f32 to vector<1x64xf32>
    %98 = arith.divf %96, %97 : vector<1x64xf32>
    %99 = vector.broadcast %89 : vector<1x64xf32> to vector<6x64xf32>
    %100 = arith.subf %85, %99 : vector<6x64xf32>
    %cst_68 = arith.constant 9.99999974E-6 : f32
    %101 = vector.broadcast %cst_68 : f32 to vector<1x64xf32>
    %102 = arith.addf %98, %101 : vector<1x64xf32>
    %103 = math.rsqrt %102 : vector<1x64xf32>
    %104 = vector.broadcast %103 : vector<1x64xf32> to vector<6x64xf32>
    %105 = arith.mulf %100, %104 : vector<6x64xf32>
    %c80 = arith.constant 80 : index
    %c0_69 = arith.constant 0 : index
    %106 = vector.load %arg5[%c80, %c0_69] : memref<88x160xf32, #tpu.memory_space<vmem>>, vector<1x64xf32>
    %107 = vector.broadcast %106 : vector<1x64xf32> to vector<6x64xf32>
    %108 = arith.mulf %105, %107 : vector<6x64xf32>
    %c81 = arith.constant 81 : index
    %c0_70 = arith.constant 0 : index
    %109 = vector.load %arg5[%c81, %c0_70] : memref<88x160xf32, #tpu.memory_space<vmem>>, vector<1x64xf32>
    %110 = vector.broadcast %109 : vector<1x64xf32> to vector<6x64xf32>
    %111 = arith.addf %108, %110 : vector<6x64xf32>
    %c82 = arith.constant 82 : index
    %c0_71 = arith.constant 0 : index
    %112 = vector.load %arg5[%c82, %c0_71] : memref<88x160xf32, #tpu.memory_space<vmem>>, vector<2x32xf32>
    %c84 = arith.constant 84 : index
    %c0_72 = arith.constant 0 : index
    %113 = vector.load %arg5[%c84, %c0_72] : memref<88x160xf32, #tpu.memory_space<vmem>>, vector<3x32xf32>
    %114 = vector.shape_cast %112 : vector<2x32xf32> to vector<2x1x32xf32>
    %115 = vector.shape_cast %113 : vector<3x32xf32> to vector<1x3x32xf32>
    %116 = vector.broadcast %114 : vector<2x1x32xf32> to vector<2x3x32xf32>
    %117 = vector.broadcast %115 : vector<1x3x32xf32> to vector<2x3x32xf32>
    %118 = arith.mulf %116, %117 : vector<2x3x32xf32>
    %cst_73 = arith.constant dense<0.000000e+00> : vector<2x3xf32>
    %119 = vector.multi_reduction <add>, %118, %cst_73 [2] : vector<2x3x32xf32> to vector<2x3xf32>
    %c0_74 = arith.constant 0 : index
    %c0_75 = arith.constant 0 : index
    %120 = vector.load %arg10[%c0_74, %c0_75] : memref<6x256xf32, #tpu.memory_space<vmem>>, vector<6x256xf32>
    %c0_76 = arith.constant 0 : index
    %c0_77 = arith.constant 0 : index
    %121 = vector.load %arg6[%c0_76, %c0_77] : memref<256x64xf32, #tpu.memory_space<vmem>>, vector<256x64xf32>
    %cst_78 = arith.constant dense<0.000000e+00> : vector<6x64xf32>
    %122 = tpu.matmul %120, %121, %cst_78 {dimension_numbers = #tpu.dot_dimension_numbers<[1], [0], [0], [1], [0, 0, 1, 1], [], []>} : vector<6x256xf32>, vector<256x64xf32>, vector<6x64xf32> -> vector<6x64xf32>
    %123 = arith.mulf %122, %122 : vector<6x64xf32>
    %cst_79 = arith.constant dense<0.000000e+00> : vector<6xf32>
    %124 = vector.multi_reduction <add>, %123, %cst_79 [1] : vector<6x64xf32> to vector<6xf32>
    %125 = vector.shape_cast %124 : vector<6xf32> to vector<6x1xf32>
    %126 = math.sqrt %125 : vector<6x1xf32>
    %cst_80 = arith.constant 9.99999996E-13 : f32
    %127 = vector.broadcast %cst_80 : f32 to vector<6x1xf32>
    %128 = arith.maximumf %126, %127 : vector<6x1xf32>
    %129 = vector.broadcast %128 : vector<6x1xf32> to vector<6x64xf32>
    %130 = arith.divf %122, %129 : vector<6x64xf32>
    %131 = arith.mulf %120, %120 : vector<6x256xf32>
    %cst_81 = arith.constant dense<0.000000e+00> : vector<6xf32>
    %132 = vector.multi_reduction <add>, %131, %cst_81 [1] : vector<6x256xf32> to vector<6xf32>
    %133 = vector.shape_cast %132 : vector<6xf32> to vector<6x1xf32>
    %134 = math.sqrt %133 : vector<6x1xf32>
    %cst_82 = arith.constant 9.99999996E-13 : f32
    %135 = vector.broadcast %cst_82 : f32 to vector<6x1xf32>
    %136 = arith.maximumf %134, %135 : vector<6x1xf32>
    %137 = vector.broadcast %136 : vector<6x1xf32> to vector<6x256xf32>
    %138 = arith.divf %120, %137 : vector<6x256xf32>
    %139 = tpu.iota {dimensions = array<i32: 1>} : vector<1x128xi32>
    %cst_83 = arith.constant 0.000000e+00 : f32
    %140 = vector.broadcast %cst_83 : f32 to vector<1x128xf32>
    %141 = vector.extract_strided_slice %111 {offsets = [0, 0], sizes = [6, 32], strides = [1, 1]} : vector<6x64xf32> to vector<6x32xf32>
    %142 = vector.extract_strided_slice %73 {offsets = [0, 0], sizes = [2, 32], strides = [1, 1]} : vector<2x64xf32> to vector<2x32xf32>
    %143 = arith.mulf %30, %30 : vector<2x64xf32>
    %cst_84 = arith.constant dense<0.000000e+00> : vector<2xf32>
    %144 = vector.multi_reduction <add>, %143, %cst_84 [1] : vector<2x64xf32> to vector<2xf32>
    %145 = vector.shape_cast %144 : vector<2xf32> to vector<2x1xf32>
    %146 = math.sqrt %145 : vector<2x1xf32>
    %cst_85 = arith.constant 9.99999996E-13 : f32
    %147 = vector.broadcast %cst_85 : f32 to vector<2x1xf32>
    %148 = arith.maximumf %146, %147 : vector<2x1xf32>
    %149 = vector.broadcast %148 : vector<2x1xf32> to vector<2x64xf32>
    %150 = arith.divf %30, %149 : vector<2x64xf32>
    %151 = vector.extract_strided_slice %141 {offsets = [0, 0], sizes = [2, 32], strides = [1, 1]} : vector<6x32xf32> to vector<2x32xf32>
    %152 = arith.mulf %151, %142 : vector<2x32xf32>
    %cst_86 = arith.constant dense<0.000000e+00> : vector<2xf32>
    %153 = vector.multi_reduction <add>, %152, %cst_86 [1] : vector<2x32xf32> to vector<2xf32>
    %154 = vector.shape_cast %153 : vector<2xf32> to vector<2x1xf32>
    %155 = vector.extract_strided_slice %119 {offsets = [0, 0], sizes = [1, 1], strides = [1, 1]} : vector<2x3xf32> to vector<1x1xf32>
    %156 = vector.broadcast %155 : vector<1x1xf32> to vector<2x1xf32>
    %157 = arith.addf %154, %156 : vector<2x1xf32>
    %cst_87 = arith.constant 0.176776692 : f32
    %158 = vector.broadcast %cst_87 : f32 to vector<2x1xf32>
    %159 = arith.mulf %157, %158 : vector<2x1xf32>
    %160 = vector.extract_strided_slice %130 {offsets = [0, 0], sizes = [2, 64], strides = [1, 1]} : vector<6x64xf32> to vector<2x64xf32>
    %161 = arith.subf %160, %150 : vector<2x64xf32>
    %162 = arith.mulf %161, %161 : vector<2x64xf32>
    %cst_88 = arith.constant dense<0.000000e+00> : vector<2xf32>
    %163 = vector.multi_reduction <add>, %162, %cst_88 [1] : vector<2x64xf32> to vector<2xf32>
    %164 = vector.shape_cast %163 : vector<2xf32> to vector<2x1xf32>
    %cst_89 = arith.constant 6.400000e+01 : f32
    %165 = vector.broadcast %cst_89 : f32 to vector<2x1xf32>
    %166 = arith.divf %164, %165 : vector<2x1xf32>
    %167 = vector.extract_strided_slice %141 {offsets = [2, 0], sizes = [2, 32], strides = [1, 1]} : vector<6x32xf32> to vector<2x32xf32>
    %168 = arith.mulf %167, %142 : vector<2x32xf32>
    %cst_90 = arith.constant dense<0.000000e+00> : vector<2xf32>
    %169 = vector.multi_reduction <add>, %168, %cst_90 [1] : vector<2x32xf32> to vector<2xf32>
    %170 = vector.shape_cast %169 : vector<2xf32> to vector<2x1xf32>
    %171 = vector.extract_strided_slice %119 {offsets = [0, 1], sizes = [1, 1], strides = [1, 1]} : vector<2x3xf32> to vector<1x1xf32>
    %172 = vector.broadcast %171 : vector<1x1xf32> to vector<2x1xf32>
    %173 = arith.addf %170, %172 : vector<2x1xf32>
    %cst_91 = arith.constant 0.176776692 : f32
    %174 = vector.broadcast %cst_91 : f32 to vector<2x1xf32>
    %175 = arith.mulf %173, %174 : vector<2x1xf32>
    %176 = vector.extract_strided_slice %130 {offsets = [2, 0], sizes = [2, 64], strides = [1, 1]} : vector<6x64xf32> to vector<2x64xf32>
    %177 = arith.subf %176, %150 : vector<2x64xf32>
    %178 = arith.mulf %177, %177 : vector<2x64xf32>
    %cst_92 = arith.constant dense<0.000000e+00> : vector<2xf32>
    %179 = vector.multi_reduction <add>, %178, %cst_92 [1] : vector<2x64xf32> to vector<2xf32>
    %180 = vector.shape_cast %179 : vector<2xf32> to vector<2x1xf32>
    %cst_93 = arith.constant 6.400000e+01 : f32
    %181 = vector.broadcast %cst_93 : f32 to vector<2x1xf32>
    %182 = arith.divf %180, %181 : vector<2x1xf32>
    %183 = vector.extract_strided_slice %141 {offsets = [4, 0], sizes = [2, 32], strides = [1, 1]} : vector<6x32xf32> to vector<2x32xf32>
    %184 = arith.mulf %183, %142 : vector<2x32xf32>
    %cst_94 = arith.constant dense<0.000000e+00> : vector<2xf32>
    %185 = vector.multi_reduction <add>, %184, %cst_94 [1] : vector<2x32xf32> to vector<2xf32>
    %186 = vector.shape_cast %185 : vector<2xf32> to vector<2x1xf32>
    %187 = vector.extract_strided_slice %119 {offsets = [0, 2], sizes = [1, 1], strides = [1, 1]} : vector<2x3xf32> to vector<1x1xf32>
    %188 = vector.broadcast %187 : vector<1x1xf32> to vector<2x1xf32>
    %189 = arith.addf %186, %188 : vector<2x1xf32>
    %cst_95 = arith.constant 0.176776692 : f32
    %190 = vector.broadcast %cst_95 : f32 to vector<2x1xf32>
    %191 = arith.mulf %189, %190 : vector<2x1xf32>
    %192 = vector.extract_strided_slice %130 {offsets = [4, 0], sizes = [2, 64], strides = [1, 1]} : vector<6x64xf32> to vector<2x64xf32>
    %193 = arith.subf %192, %150 : vector<2x64xf32>
    %194 = arith.mulf %193, %193 : vector<2x64xf32>
    %cst_96 = arith.constant dense<0.000000e+00> : vector<2xf32>
    %195 = vector.multi_reduction <add>, %194, %cst_96 [1] : vector<2x64xf32> to vector<2xf32>
    %196 = vector.shape_cast %195 : vector<2xf32> to vector<2x1xf32>
    %cst_97 = arith.constant 6.400000e+01 : f32
    %197 = vector.broadcast %cst_97 : f32 to vector<2x1xf32>
    %198 = arith.divf %196, %197 : vector<2x1xf32>
    %199 = arith.maximumf %159, %175 : vector<2x1xf32>
    %200 = arith.maximumf %199, %191 : vector<2x1xf32>
    %201 = arith.subf %159, %200 : vector<2x1xf32>
    %202 = math.exp %201 : vector<2x1xf32>
    %203 = arith.subf %175, %200 : vector<2x1xf32>
    %204 = math.exp %203 : vector<2x1xf32>
    %205 = arith.subf %191, %200 : vector<2x1xf32>
    %206 = math.exp %205 : vector<2x1xf32>
    %207 = arith.mulf %166, %202 : vector<2x1xf32>
    %208 = arith.addf %202, %204 : vector<2x1xf32>
    %209 = arith.mulf %182, %204 : vector<2x1xf32>
    %210 = arith.addf %207, %209 : vector<2x1xf32>
    %211 = arith.addf %208, %206 : vector<2x1xf32>
    %212 = arith.mulf %198, %206 : vector<2x1xf32>
    %213 = arith.addf %210, %212 : vector<2x1xf32>
    %214 = arith.divf %213, %211 : vector<2x1xf32>
    %cst_98 = arith.constant dense<0.000000e+00> : vector<1xf32>
    %215 = vector.multi_reduction <add>, %214, %cst_98 [0] : vector<2x1xf32> to vector<1xf32>
    %216 = vector.shape_cast %215 : vector<1xf32> to vector<1x1xf32>
    %cst_99 = arith.constant 5.000000e-01 : f32
    %217 = vector.broadcast %cst_99 : f32 to vector<1x1xf32>
    %218 = arith.mulf %216, %217 : vector<1x1xf32>
    %c0_i32 = arith.constant 0 : i32
    %219 = vector.broadcast %c0_i32 : i32 to vector<1x128xi32>
    %220 = arith.cmpi eq, %139, %219 : vector<1x128xi32>
    %cst_100 = arith.constant 0.000000e+00 : f32
    %221 = vector.shape_cast %218 : vector<1x1xf32> to vector<1x1xf32>
    %222 = vector.broadcast %221 : vector<1x1xf32> to vector<1x128xf32>
    %223 = vector.broadcast %cst_100 : f32 to vector<1x128xf32>
    %224 = arith.select %220, %222, %223 : vector<1x128xi1>, vector<1x128xf32>
    %225 = arith.addf %140, %224 : vector<1x128xf32>
    %226 = vector.extract_strided_slice %111 {offsets = [0, 32], sizes = [6, 32], strides = [1, 1]} : vector<6x64xf32> to vector<6x32xf32>
    %227 = vector.extract_strided_slice %73 {offsets = [0, 32], sizes = [2, 32], strides = [1, 1]} : vector<2x64xf32> to vector<2x32xf32>
    %228 = arith.mulf %37, %37 : vector<2x256xf32>
    %cst_101 = arith.constant dense<0.000000e+00> : vector<2xf32>
    %229 = vector.multi_reduction <add>, %228, %cst_101 [1] : vector<2x256xf32> to vector<2xf32>
    %230 = vector.shape_cast %229 : vector<2xf32> to vector<2x1xf32>
    %231 = math.sqrt %230 : vector<2x1xf32>
    %cst_102 = arith.constant 9.99999996E-13 : f32
    %232 = vector.broadcast %cst_102 : f32 to vector<2x1xf32>
    %233 = arith.maximumf %231, %232 : vector<2x1xf32>
    %234 = vector.broadcast %233 : vector<2x1xf32> to vector<2x256xf32>
    %235 = arith.divf %37, %234 : vector<2x256xf32>
    %236 = vector.extract_strided_slice %226 {offsets = [0, 0], sizes = [2, 32], strides = [1, 1]} : vector<6x32xf32> to vector<2x32xf32>
    %237 = arith.mulf %236, %227 : vector<2x32xf32>
    %cst_103 = arith.constant dense<0.000000e+00> : vector<2xf32>
    %238 = vector.multi_reduction <add>, %237, %cst_103 [1] : vector<2x32xf32> to vector<2xf32>
    %239 = vector.shape_cast %238 : vector<2xf32> to vector<2x1xf32>
    %240 = vector.extract_strided_slice %119 {offsets = [1, 0], sizes = [1, 1], strides = [1, 1]} : vector<2x3xf32> to vector<1x1xf32>
    %241 = vector.broadcast %240 : vector<1x1xf32> to vector<2x1xf32>
    %242 = arith.addf %239, %241 : vector<2x1xf32>
    %cst_104 = arith.constant 0.176776692 : f32
    %243 = vector.broadcast %cst_104 : f32 to vector<2x1xf32>
    %244 = arith.mulf %242, %243 : vector<2x1xf32>
    %245 = vector.extract_strided_slice %138 {offsets = [0, 0], sizes = [2, 256], strides = [1, 1]} : vector<6x256xf32> to vector<2x256xf32>
    %246 = arith.subf %245, %235 : vector<2x256xf32>
    %247 = arith.mulf %246, %246 : vector<2x256xf32>
    %cst_105 = arith.constant dense<0.000000e+00> : vector<2xf32>
    %248 = vector.multi_reduction <add>, %247, %cst_105 [1] : vector<2x256xf32> to vector<2xf32>
    %249 = vector.shape_cast %248 : vector<2xf32> to vector<2x1xf32>
    %cst_106 = arith.constant 2.560000e+02 : f32
    %250 = vector.broadcast %cst_106 : f32 to vector<2x1xf32>
    %251 = arith.divf %249, %250 : vector<2x1xf32>
    %252 = vector.extract_strided_slice %226 {offsets = [2, 0], sizes = [2, 32], strides = [1, 1]} : vector<6x32xf32> to vector<2x32xf32>
    %253 = arith.mulf %252, %227 : vector<2x32xf32>
    %cst_107 = arith.constant dense<0.000000e+00> : vector<2xf32>
    %254 = vector.multi_reduction <add>, %253, %cst_107 [1] : vector<2x32xf32> to vector<2xf32>
    %255 = vector.shape_cast %254 : vector<2xf32> to vector<2x1xf32>
    %256 = vector.extract_strided_slice %119 {offsets = [1, 1], sizes = [1, 1], strides = [1, 1]} : vector<2x3xf32> to vector<1x1xf32>
    %257 = vector.broadcast %256 : vector<1x1xf32> to vector<2x1xf32>
    %258 = arith.addf %255, %257 : vector<2x1xf32>
    %cst_108 = arith.constant 0.176776692 : f32
    %259 = vector.broadcast %cst_108 : f32 to vector<2x1xf32>
    %260 = arith.mulf %258, %259 : vector<2x1xf32>
    %261 = vector.extract_strided_slice %138 {offsets = [2, 0], sizes = [2, 256], strides = [1, 1]} : vector<6x256xf32> to vector<2x256xf32>
    %262 = arith.subf %261, %235 : vector<2x256xf32>
    %263 = arith.mulf %262, %262 : vector<2x256xf32>
    %cst_109 = arith.constant dense<0.000000e+00> : vector<2xf32>
    %264 = vector.multi_reduction <add>, %263, %cst_109 [1] : vector<2x256xf32> to vector<2xf32>
    %265 = vector.shape_cast %264 : vector<2xf32> to vector<2x1xf32>
    %cst_110 = arith.constant 2.560000e+02 : f32
    %266 = vector.broadcast %cst_110 : f32 to vector<2x1xf32>
    %267 = arith.divf %265, %266 : vector<2x1xf32>
    %268 = vector.extract_strided_slice %226 {offsets = [4, 0], sizes = [2, 32], strides = [1, 1]} : vector<6x32xf32> to vector<2x32xf32>
    %269 = arith.mulf %268, %227 : vector<2x32xf32>
    %cst_111 = arith.constant dense<0.000000e+00> : vector<2xf32>
    %270 = vector.multi_reduction <add>, %269, %cst_111 [1] : vector<2x32xf32> to vector<2xf32>
    %271 = vector.shape_cast %270 : vector<2xf32> to vector<2x1xf32>
    %272 = vector.extract_strided_slice %119 {offsets = [1, 2], sizes = [1, 1], strides = [1, 1]} : vector<2x3xf32> to vector<1x1xf32>
    %273 = vector.broadcast %272 : vector<1x1xf32> to vector<2x1xf32>
    %274 = arith.addf %271, %273 : vector<2x1xf32>
    %cst_112 = arith.constant 0.176776692 : f32
    %275 = vector.broadcast %cst_112 : f32 to vector<2x1xf32>
    %276 = arith.mulf %274, %275 : vector<2x1xf32>
    %277 = vector.extract_strided_slice %138 {offsets = [4, 0], sizes = [2, 256], strides = [1, 1]} : vector<6x256xf32> to vector<2x256xf32>
    %278 = arith.subf %277, %235 : vector<2x256xf32>
    %279 = arith.mulf %278, %278 : vector<2x256xf32>
    %cst_113 = arith.constant dense<0.000000e+00> : vector<2xf32>
    %280 = vector.multi_reduction <add>, %279, %cst_113 [1] : vector<2x256xf32> to vector<2xf32>
    %281 = vector.shape_cast %280 : vector<2xf32> to vector<2x1xf32>
    %cst_114 = arith.constant 2.560000e+02 : f32
    %282 = vector.broadcast %cst_114 : f32 to vector<2x1xf32>
    %283 = arith.divf %281, %282 : vector<2x1xf32>
    %284 = arith.maximumf %244, %260 : vector<2x1xf32>
    %285 = arith.maximumf %284, %276 : vector<2x1xf32>
    %286 = arith.subf %244, %285 : vector<2x1xf32>
    %287 = math.exp %286 : vector<2x1xf32>
    %288 = arith.subf %260, %285 : vector<2x1xf32>
    %289 = math.exp %288 : vector<2x1xf32>
    %290 = arith.subf %276, %285 : vector<2x1xf32>
    %291 = math.exp %290 : vector<2x1xf32>
    %292 = arith.mulf %251, %287 : vector<2x1xf32>
    %293 = arith.addf %287, %289 : vector<2x1xf32>
    %294 = arith.mulf %267, %289 : vector<2x1xf32>
    %295 = arith.addf %292, %294 : vector<2x1xf32>
    %296 = arith.addf %293, %291 : vector<2x1xf32>
    %297 = arith.mulf %283, %291 : vector<2x1xf32>
    %298 = arith.addf %295, %297 : vector<2x1xf32>
    %299 = arith.divf %298, %296 : vector<2x1xf32>
    %cst_115 = arith.constant dense<0.000000e+00> : vector<1xf32>
    %300 = vector.multi_reduction <add>, %299, %cst_115 [0] : vector<2x1xf32> to vector<1xf32>
    %301 = vector.shape_cast %300 : vector<1xf32> to vector<1x1xf32>
    %cst_116 = arith.constant 5.000000e-01 : f32
    %302 = vector.broadcast %cst_116 : f32 to vector<1x1xf32>
    %303 = arith.mulf %301, %302 : vector<1x1xf32>
    %c1_i32 = arith.constant 1 : i32
    %304 = vector.broadcast %c1_i32 : i32 to vector<1x128xi32>
    %305 = arith.cmpi eq, %139, %304 : vector<1x128xi32>
    %cst_117 = arith.constant 0.000000e+00 : f32
    %306 = vector.shape_cast %303 : vector<1x1xf32> to vector<1x1xf32>
    %307 = vector.broadcast %306 : vector<1x1xf32> to vector<1x128xf32>
    %308 = vector.broadcast %cst_117 : f32 to vector<1x128xf32>
    %309 = arith.select %305, %307, %308 : vector<1x128xi1>, vector<1x128xf32>
    %310 = arith.addf %225, %309 : vector<1x128xf32>
    %c0_118 = arith.constant 0 : index
    %c0_119 = arith.constant 0 : index
    %311 = vector.load %arg7[%c0_118, %c0_119] : memref<1x128xf32, #tpu.memory_space<vmem>>, vector<1x128xf32>
    tpu.vector_store %arg7[%c0_118, %c0_119], %310 {strides = array<i32>} : memref<1x128xf32, #tpu.memory_space<vmem>>, vector<1x128xf32>,
    return
  }
}

</mosaic_0001>

<llo_original>
// kernel: attention_forward.1
$region0: #{attention_forward.1}
  #allocation0 [shape = 'u32[]', space=smem, size = 0x4, offset = 0x4, fixed_abs, tag = 'smem constant byte address 0x4 - core index']
  #allocation1 [shape = 'u32[144,128]{1,0:T(1,128)}', space=vmem, size = 0x12000, scoped, tag = 'internal scratch']
  #allocation2 [shape = 'f32[2,44]{1,0:T(2,128)}', space=vmem, size = 0x400, scoped, tag = 'scratch operand']
  #allocation3 [shape = 'f32[6,32]{1,0:T(8,128)}', space=vmem, size = 0x1000, scoped, tag = 'scratch operand']
  #allocation4 [shape = 'f32[6,256]{1,0:T(8,128)}', space=vmem, size = 0x2000, scoped, tag = 'scratch operand']
  %s0 = inlined_call_operand.vmem [shape: f32[2,4,256], index: 0, kind: input, shape index: {}]
  %s1 = inlined_call_operand.vmem [shape: f32[2,8,256], index: 1, kind: input, shape index: {}]
  %s2 = inlined_call_operand.vmem [shape: f32[2,8,256], index: 2, kind: input, shape index: {}]
  %s3 = inlined_call_operand.vmem [shape: f32[2,8,64], index: 3, kind: input, shape index: {}]
  %s4 = inlined_call_operand.vmem [shape: f32[2,16,256], index: 4, kind: input, shape index: {}]
  %s5 = inlined_call_operand.vmem [shape: f32[88,160], index: 5, kind: input, shape index: {}]
  %s6 = inlined_call_operand.vmem [shape: f32[256,64], index: 6, kind: input, shape index: {}]
  %s7 = inlined_call_operand.vmem [shape: f32[1,128], index: 7, kind: output, shape index: {}]
  %s8 = sld [smem:[#allocation0]]
  $region38: #{attention_forward.1} parent=0
    _
  %s10 = ssub.s32 1, %s8
  %s11 = scalar_select 0, %s10, %s8
  // Predicated region
  $region2: #{attention_forward.1} parent=0 // pred_check
    _
  $region3: #{attention_forward.1} parent=0 // pred_check_branch
    %13 = sbr.rel (0) target = $region5
  $region4: #{attention_forward.1} parent=0 // pred_region
    _
  $region5: #{attention_forward.1} parent=0 // pred_fallthru
    _
  // Predicated region
  $region6: #{attention_forward.1} parent=0 // pred_check
    _
  $region7: #{attention_forward.1} parent=0 // pred_check_branch
    %15 = sbr.rel (0) target = $region9
  $region8: #{attention_forward.1} parent=0 // pred_region
    _
  $region9: #{attention_forward.1} parent=0 // pred_fallthru
    _
  // Predicated region
  $region10: #{attention_forward.1} parent=0 // pred_check
    _
  $region11: #{attention_forward.1} parent=0 // pred_check_branch
    %17 = sbr.rel (0) target = $region13
  $region12: #{attention_forward.1} parent=0 // pred_region
    _
  $region13: #{attention_forward.1} parent=0 // pred_fallthru
    _
  // Predicated region
  $region14: #{attention_forward.1} parent=0 // pred_check
    _
  $region15: #{attention_forward.1} parent=0 // pred_check_branch
    %19 = sbr.rel (0) target = $region17
  $region16: #{attention_forward.1} parent=0 // pred_region
    _
  $region17: #{attention_forward.1} parent=0 // pred_fallthru
    _
  // Predicated region
  $region18: #{attention_forward.1} parent=0 // pred_check
    _
  $region19: #{attention_forward.1} parent=0 // pred_check_branch
    %21 = sbr.rel (0) target = $region21
  $region20: #{attention_forward.1} parent=0 // pred_region
    _
  $region21: #{attention_forward.1} parent=0 // pred_fallthru
    _
  // Predicated region
  $region22: #{attention_forward.1} parent=0 // pred_check
    _
  $region23: #{attention_forward.1} parent=0 // pred_check_branch
    %23 = sbr.rel (0) target = $region25
  $region24: #{attention_forward.1} parent=0 // pred_region
    _
  $region25: #{attention_forward.1} parent=0 // pred_fallthru
    _
  // Predicated region
  $region26: #{attention_forward.1} parent=0 // pred_check
    _
  $region27: #{attention_forward.1} parent=0 // pred_check_branch
    %25 = sbr.rel (0) target = $region29
  $region28: #{attention_forward.1} parent=0 // pred_region
    _
  $region29: #{attention_forward.1} parent=0 // pred_fallthru
    _
  %v26 = vld [vmem:[%s0] sm:$0xff]
  %v27 = vld [vmem:[%s0 + $0x8] sm:$0xff]
  %v30 = vcombine.high %v26, %v26
  %v31 = vcombine.high %v27, %v27
  %vm34 = vcmask 1043456
  %v35 = vsel %vm34, %v26, 0.0
  %v36 = vsel %vm34, %v30, 0.0
  %v37 = vadd.f32 %v35, %v36
  %38 = vadd.xlane.f32.xlu0 %v37
  %v39 = vpop.xlane.xlu0 %38
  %v40 = vsel %vm34, %v27, 0.0
  %v41 = vsel %vm34, %v31, 0.0
  %v42 = vadd.f32 %v40, %v41
  %43 = vadd.xlane.f32.xlu0 %v42
  %v44 = vpop.xlane.xlu0 %43
  %v47 = vlaneseq
  %v48 = vand.u32 %v47, 127
  %v49 = vlaneseq
  %v50 = vshrl.u32 %v49, 7
  %v51 = vsub.s32 %v48, %v50
  %v52 = vrot.slane %v39, %v51
  %v53 = vlaneseq
  %v54 = vshrl.u32 %v53, 7
  %v55 = vsub.s32 %v48, %v54
  %v56 = vrot.slane %v44, %v55
  %vm57 = vcmask 1041409
  %v58 = vsel %vm57, %v56, %v52
  %vm60 = vcmask 25600
  %61 = vst.msk [vmem:[#allocation2] sm:$0x3] %vm60, %v58
  %v62 = vmul.f32 %v26, %v26
  %v63 = vmul.f32 %v27, %v27
  %v66 = vcombine.high %v62, %v62
  %v67 = vcombine.high %v63, %v63
  %v70 = vsel %vm34, %v62, 0.0
  %v71 = vrot.slane %v70, 4
  %v72 = vadd.f32 %v70, %v71
  %v73 = vrot.slane %v72, 2
  %v74 = vadd.f32 %v72, %v73
  %v75 = vrot.slane %v74, 1
  %v76 = vadd.f32 %v74, %v75
  %v77 = vsel %vm34, %v66, 0.0
  %v78 = vrot.slane %v77, 4
  %v79 = vadd.f32 %v77, %v78
  %v80 = vrot.slane %v79, 2
  %v81 = vadd.f32 %v79, %v80
  %v82 = vrot.slane %v81, 1
  %v83 = vadd.f32 %v81, %v82
  %v84 = vsel %vm34, %v63, 0.0
  %v85 = vrot.slane %v84, 4
  %v86 = vadd.f32 %v84, %v85
  %v87 = vrot.slane %v86, 2
  %v88 = vadd.f32 %v86, %v87
  %v89 = vrot.slane %v88, 1
  %v90 = vadd.f32 %v88, %v89
  %v91 = vsel %vm34, %v67, 0.0
  %v92 = vrot.slane %v91, 4
  %v93 = vadd.f32 %v91, %v92
  %v94 = vrot.slane %v93, 2
  %v95 = vadd.f32 %v93, %v94
  %v96 = vrot.slane %v95, 1
  %v97 = vadd.f32 %v95, %v96
  %v98 = vrcp.pop 4.0
  %v99 = vmul.f32 %v76, %v98
  %v100 = vmul.f32 %v83, %v98
  %v101 = vmul.f32 %v90, %v98
  %v102 = vmul.f32 %v97, %v98
  %v107 = vsel %vm57, %v101, %v99
  %v108 = vsel %vm57, %v102, %v100
  %111 = vst [vmem:[#allocation4] sm:$0x3] %v107
  %112 = vst [vmem:[#allocation4 + $0x8] sm:$0x3] %v108
  %v113 = vld [vmem:[%s1] sm:$0xff]
  %v114 = vld [vmem:[%s1 + $0x8] sm:$0xff]
  %v115 = vld [vmem:[%s1 + $0x10] sm:$0xff]
  %v116 = vld [vmem:[%s1 + $0x18] sm:$0xff]
  %v117 = vadd.f32 %v113, %v114
  %118 = vadd.xlane.f32.xlu0 %v117
  %v119 = vpop.xlane.xlu0 %118
  %v120 = vadd.f32 %v115, %v116
  %121 = vadd.xlane.f32.xlu0 %v120
  %v122 = vpop.xlane.xlu0 %121
  %v125 = vadd.s32 %v48, 4294967292
  %v126 = vlaneseq
  %v127 = vshrl.u32 %v126, 7
  %v128 = vsub.s32 %v125, %v127
  %v129 = vrot.slane %v119, %v128
  %v130 = vlaneseq
  %v131 = vshrl.u32 %v130, 7
  %v132 = vsub.s32 %v125, %v131
  %v133 = vrot.slane %v122, %v132
  %v134 = vsel %vm57, %v133, %v129
  %vm136 = vcmask 91168
  %137 = vst.msk [vmem:[#allocation2] sm:$0x3] %vm136, %v134
  %v138 = vmul.f32 %v113, %v113
  %v139 = vmul.f32 %v114, %v114
  %v140 = vmul.f32 %v115, %v115
  %v141 = vmul.f32 %v116, %v116
  %v142 = vrot.slane %v138, 4
  %v143 = vadd.f32 %v138, %v142
  %v144 = vrot.slane %v143, 2
  %v145 = vadd.f32 %v143, %v144
  %v146 = vrot.slane %v145, 1
  %v147 = vadd.f32 %v145, %v146
  %v148 = vrot.slane %v139, 4
  %v149 = vadd.f32 %v139, %v148
  %v150 = vrot.slane %v149, 2
  %v151 = vadd.f32 %v149, %v150
  %v152 = vrot.slane %v151, 1
  %v153 = vadd.f32 %v151, %v152
  %v154 = vrot.slane %v140, 4
  %v155 = vadd.f32 %v140, %v154
  %v156 = vrot.slane %v155, 2
  %v157 = vadd.f32 %v155, %v156
  %v158 = vrot.slane %v157, 1
  %v159 = vadd.f32 %v157, %v158
  %v160 = vrot.slane %v141, 4
  %v161 = vadd.f32 %v141, %v160
  %v162 = vrot.slane %v161, 2
  %v163 = vadd.f32 %v161, %v162
  %v164 = vrot.slane %v163, 1
  %v165 = vadd.f32 %v163, %v164
  %v166 = vrcp.pop 8.0
  %v167 = vmul.f32 %v147, %v166
  %v168 = vmul.f32 %v153, %v166
  %v169 = vmul.f32 %v159, %v166
  %v170 = vmul.f32 %v165, %v166
  %vm175 = vcmask 1043459
  %v176 = vsel %vm175, %v169, %v167
  %v177 = vsel %vm175, %v170, %v168
  %180 = vst [vmem:[#allocation4] sm:$0xc] %v176
  %181 = vst [vmem:[#allocation4 + $0x8] sm:$0xc] %v177
  %v182 = vld [vmem:[%s2] sm:$0xff]
  %v183 = vld [vmem:[%s2 + $0x8] sm:$0xff]
  %v184 = vld [vmem:[%s2 + $0x10] sm:$0xff]
  %v185 = vld [vmem:[%s2 + $0x18] sm:$0xff]
  %v186 = vadd.f32 %v182, %v183
  %187 = vadd.xlane.f32.xlu0 %v186
  %v188 = vpop.xlane.xlu0 %187
  %v189 = vadd.f32 %v184, %v185
  %190 = vadd.xlane.f32.xlu0 %v189
  %v191 = vpop.xlane.xlu0 %190
  %v194 = vadd.s32 %v48, 4294967284
  %v195 = vlaneseq
  %v196 = vshrl.u32 %v195, 7
  %v197 = vsub.s32 %v194, %v196
  %v198 = vrot.slane %v188, %v197
  %v199 = vlaneseq
  %v200 = vshrl.u32 %v199, 7
  %v201 = vsub.s32 %v194, %v200
  %v202 = vrot.slane %v191, %v201
  %v203 = vsel %vm57, %v202, %v198
  %vm205 = vcmask 156768
  %206 = vst.msk [vmem:[#allocation2] sm:$0x3] %vm205, %v203
  %v207 = vmul.f32 %v182, %v182
  %v208 = vmul.f32 %v183, %v183
  %v209 = vmul.f32 %v184, %v184
  %v210 = vmul.f32 %v185, %v185
  %v211 = vrot.slane %v207, 4
  %v212 = vadd.f32 %v207, %v211
  %v213 = vrot.slane %v212, 2
  %v214 = vadd.f32 %v212, %v213
  %v215 = vrot.slane %v214, 1
  %v216 = vadd.f32 %v214, %v215
  %v217 = vrot.slane %v208, 4
  %v218 = vadd.f32 %v208, %v217
  %v219 = vrot.slane %v218, 2
  %v220 = vadd.f32 %v218, %v219
  %v221 = vrot.slane %v220, 1
  %v222 = vadd.f32 %v220, %v221
  %v223 = vrot.slane %v209, 4
  %v224 = vadd.f32 %v209, %v223
  %v225 = vrot.slane %v224, 2
  %v226 = vadd.f32 %v224, %v225
  %v227 = vrot.slane %v226, 1
  %v228 = vadd.f32 %v226, %v227
  %v229 = vrot.slane %v210, 4
  %v230 = vadd.f32 %v210, %v229
  %v231 = vrot.slane %v230, 2
  %v232 = vadd.f32 %v230, %v231
  %v233 = vrot.slane %v232, 1
  %v234 = vadd.f32 %v232, %v233
  %v235 = vmul.f32 %v216, %v166
  %v236 = vmul.f32 %v222, %v166
  %v237 = vmul.f32 %v228, %v166
  %v238 = vmul.f32 %v234, %v166
  %vm243 = vcmask 1045509
  %v244 = vsel %vm243, %v237, %v235
  %v245 = vsel %vm243, %v238, %v236
  %248 = vst [vmem:[#allocation4] sm:$0x30] %v244
  %249 = vst [vmem:[#allocation4 + $0x8] sm:$0x30] %v245
  %v250 = vld [vmem:[%s3] sm:$0xff]
  %v251 = vld [vmem:[%s3 + $0x8] sm:$0xff]
  %vm252 = vcmask 523264
  %v253 = vsel %vm252, %v250, 0.0
  %254 = vadd.xlane.f32.xlu0 %v253
  %v255 = vpop.xlane.xlu0 %254
  %v256 = vsel %vm252, %v251, 0.0
  %257 = vadd.xlane.f32.xlu0 %v256
  %v258 = vpop.xlane.xlu0 %257
  %v261 = vadd.s32 %v48, 4294967276
  %v262 = vlaneseq
  %v263 = vshrl.u32 %v262, 7
  %v264 = vsub.s32 %v261, %v263
  %v265 = vrot.slane %v255, %v264
  %v266 = vlaneseq
  %v267 = vshrl.u32 %v266, 7
  %v268 = vsub.s32 %v261, %v267
  %v269 = vrot.slane %v258, %v268
  %v270 = vsel %vm57, %v269, %v265
  %vm272 = vcmask 222368
  %273 = vst.msk [vmem:[#allocation2] sm:$0x3] %vm272, %v270
  %v274 = vmul.f32 %v250, %v250
  %v275 = vmul.f32 %v251, %v251
  %v276 = vsel %vm252, %v274, 0.0
  %v277 = vrot.slane %v276, 4
  %v278 = vadd.f32 %v276, %v277
  %v279 = vrot.slane %v278, 2
  %v280 = vadd.f32 %v278, %v279
  %v281 = vrot.slane %v280, 1
  %v282 = vadd.f32 %v280, %v281
  %v283 = vsel %vm252, %v275, 0.0
  %v284 = vrot.slane %v283, 4
  %v285 = vadd.f32 %v283, %v284
  %v286 = vrot.slane %v285, 2
  %v287 = vadd.f32 %v285, %v286
  %v288 = vrot.slane %v287, 1
  %v289 = vadd.f32 %v287, %v288
  %v290 = vmul.f32 %v282, %v166
  %v291 = vmul.f32 %v289, %v166
  %v292 = vld [vmem:[%s4] sm:$0xff]
  %v293 = vld [vmem:[%s4 + $0x8] sm:$0xff]
  %v294 = vld [vmem:[%s4 + $0x10] sm:$0xff]
  %v295 = vld [vmem:[%s4 + $0x18] sm:$0xff]
  %v296 = vld [vmem:[%s4 + $0x20] sm:$0xff]
  %v297 = vld [vmem:[%s4 + $0x28] sm:$0xff]
  %v298 = vld [vmem:[%s4 + $0x30] sm:$0xff]
  %v299 = vld [vmem:[%s4 + $0x38] sm:$0xff]
  %v300 = vadd.f32 %v292, %v293
  %301 = vadd.xlane.f32.xlu0 %v300
  %v302 = vpop.xlane.xlu0 %301
  %v303 = vadd.f32 %v294, %v295
  %304 = vadd.xlane.f32.xlu0 %v303
  %v305 = vpop.xlane.xlu0 %304
  %v306 = vadd.f32 %v296, %v297
  %307 = vadd.xlane.f32.xlu0 %v306
  %v308 = vpop.xlane.xlu0 %307
  %v309 = vadd.f32 %v298, %v299
  %310 = vadd.xlane.f32.xlu0 %v309
  %v311 = vpop.xlane.xlu0 %310
  %v316 = vadd.s32 %v48, 4294967268
  %v317 = vlaneseq
  %v318 = vshrl.u32 %v317, 7
  %v319 = vsub.s32 %v316, %v318
  %v320 = vrot.slane %v302, %v319
  %v321 = vadd.s32 %v48, 4294967260
  %v322 = vlaneseq
  %v323 = vshrl.u32 %v322, 7
  %v324 = vsub.s32 %v321, %v323
  %v325 = vrot.slane %v305, %v324
  %vm326 = vcmask 359712
  %v327 = vsel %vm326, %v325, %v320
  %v328 = vlaneseq
  %v329 = vshrl.u32 %v328, 7
  %v330 = vsub.s32 %v316, %v329
  %v331 = vrot.slane %v308, %v330
  %v332 = vlaneseq
  %v333 = vshrl.u32 %v332, 7
  %v334 = vsub.s32 %v321, %v333
  %v335 = vrot.slane %v311, %v334
  %v336 = vsel %vm326, %v335, %v331
  %v337 = vsel %vm57, %v336, %v327
  %vm339 = vcmask 353504
  %340 = vst.msk [vmem:[#allocation2] sm:$0x3] %vm339, %v337
  %v341 = vmul.f32 %v292, %v292
  %v342 = vmul.f32 %v293, %v293
  %v343 = vmul.f32 %v294, %v294
  %v344 = vmul.f32 %v295, %v295
  %v345 = vmul.f32 %v296, %v296
  %v346 = vmul.f32 %v297, %v297
  %v347 = vmul.f32 %v298, %v298
  %v348 = vmul.f32 %v299, %v299
  %v349 = vadd.f32 %v341, %v343
  %v350 = vrot.slane %v349, 4
  %v351 = vadd.f32 %v349, %v350
  %v352 = vrot.slane %v351, 2
  %v353 = vadd.f32 %v351, %v352
  %v354 = vrot.slane %v353, 1
  %v355 = vadd.f32 %v353, %v354
  %v356 = vadd.f32 %v342, %v344
  %v357 = vrot.slane %v356, 4
  %v358 = vadd.f32 %v356, %v357
  %v359 = vrot.slane %v358, 2
  %v360 = vadd.f32 %v358, %v359
  %v361 = vrot.slane %v360, 1
  %v362 = vadd.f32 %v360, %v361
  %v363 = vadd.f32 %v345, %v347
  %v364 = vrot.slane %v363, 4
  %v365 = vadd.f32 %v363, %v364
  %v366 = vrot.slane %v365, 2
  %v367 = vadd.f32 %v365, %v366
  %v368 = vrot.slane %v367, 1
  %v369 = vadd.f32 %v367, %v368
  %v370 = vadd.f32 %v346, %v348
  %v371 = vrot.slane %v370, 4
  %v372 = vadd.f32 %v370, %v371
  %v373 = vrot.slane %v372, 2
  %v374 = vadd.f32 %v372, %v373
  %v375 = vrot.slane %v374, 1
  %v376 = vadd.f32 %v374, %v375
  %v377 = vrcp.pop 16.0
  %v378 = vmul.f32 %v355, %v377
  %v379 = vmul.f32 %v362, %v377
  %v380 = vmul.f32 %v369, %v377
  %v381 = vmul.f32 %v376, %v377
  %v382 = vld [vmem:[#allocation2] sm:$0x3]
  %v383 = vld [vmem:[%s5] sm:$0xff]
  %v384 = vld [vmem:[%s5 + $0x8] sm:$0xff]
  %v385 = vld [vmem:[%s5 + $0x10] sm:$0xff]
  %v386 = vld [vmem:[%s5 + $0x18] sm:$0xff]
  %v387 = vld [vmem:[%s5 + $0x20] sm:$0xff]
  %v388 = vld [vmem:[%s5 + $0x28] sm:$0xff]
  %v389 = vld [vmem:[%s5 + $0x30] sm:$0xff]
  %v390 = vld [vmem:[%s5 + $0x38] sm:$0xff]
  %v391 = vld [vmem:[%s5 + $0x40] sm:$0xff]
  %v392 = vld [vmem:[%s5 + $0x48] sm:$0xff]
  %v393 = vld [vmem:[%s5 + $0x50] sm:$0xf]
  %v394 = vld [vmem:[%s5 + $0x58] sm:$0xf]
  %s395 = scalar_lea.vmem %s5, 84
  %v396 = vld [vmem:[%s395] ss:$8 sm:$0x3]
  %v398 = vlaneseq
  %v399 = vshrl.u32 %v398, 7
  %v400 = vsub.s32 0, %v399
  %v401 = vrot.slane %v396, %v400
  %v402 = vlaneseq
  %v403 = vshrl.u32 %v402, 7
  %v404 = vsub.s32 1, %v403
  %v405 = vrot.slane %v396, %v404
  %vm408 = vcmask 359424
  %v410 = vsel %vm408, %v382, 0
  %v413 = vsel %vm34, %v393, 0
  %v416 = vsel %vm34, %v394, 0
  %418 = vmatprep.subr.mxu0 0.0
  %419 = vmatpush1.msra.mxu0 0.0
  %420 = vmatprep.subr.mxu0 0.0
  %421 = vmatpush1.msra.mxu0 0.0
  %422 = vmatprep.subr.mxu0 0.0
  %423 = vmatpush1.msra.mxu0 0.0
  %424 = vmatprep.subr.mxu0 0.0
  %425 = vmatpush1.msra.mxu0 0.0
  %426 = vmatprep.subr.mxu0 0.0
  %427 = vmatpush1.msra.mxu0 0.0
  %428 = vmatprep.subr.mxu0 0.0
  %429 = vmatpush1.msra.mxu0 0.0
  %430 = vmatprep.subr.mxu0 0.0
  %431 = vmatpush1.msra.mxu0 0.0
  %432 = vmatprep.subr.mxu0 0.0
  %433 = vmatpush1.msra.mxu0 0.0
  %434 = vmatprep.subr.mxu0 0.0
  %435 = vmatpush1.msra.mxu0 0.0
  %436 = vmatprep.subr.mxu0 0.0
  %437 = vmatpush1.msra.mxu0 0.0
  %438 = vmatprep.subr.mxu0 %v416
  %439 = vmatpush1.msra.mxu0 %v413
  %440 = vmatprep.subr.mxu0 %v392
  %441 = vmatpush1.msra.mxu0 %v391
  %442 = vmatprep.subr.mxu0 %v390
  %443 = vmatpush1.msra.mxu0 %v389
  %444 = vmatprep.subr.mxu0 %v388
  %445 = vmatpush1.msra.mxu0 %v387
  %446 = vmatprep.subr.mxu0 %v386
  %447 = vmatpush1.msra.mxu0 %v385
  %448 = vmatprep.subr.mxu0 %v384
  %449 = vmatpush1.msra.mxu0 %v383
  %450 = vmatprep.subr.mxu0 0.0
  %451 = vmatpush2.msra.mxu0 0.0
  %452 = vmatprep.subr.mxu0 0.0
  %453 = vmatpush2.msra.mxu0 0.0
  %454 = vmatprep.subr.mxu0 0.0
  %455 = vmatpush2.msra.mxu0 0.0
  %456 = vmatprep.subr.mxu0 0.0
  %457 = vmatpush2.msra.mxu0 0.0
  %458 = vmatprep.subr.mxu0 0.0
  %459 = vmatpush2.msra.mxu0 0.0
  %460 = vmatprep.subr.mxu0 0.0
  %461 = vmatpush2.msra.mxu0 0.0
  %462 = vmatprep.subr.mxu0 0.0
  %463 = vmatpush2.msra.mxu0 0.0
  %464 = vmatprep.subr.mxu0 0.0
  %465 = vmatpush2.msra.mxu0 0.0
  %466 = vmatprep.subr.mxu0 0.0
  %467 = vmatpush2.msra.mxu0 0.0
  %468 = vmatprep.subr.mxu0 0.0
  %469 = vmatpush2.msra.mxu0 0.0
  %470 = vmatprep.subr.mxu0 0.0
  %471 = vmatpush2.msra.mxu0 0.0
  %472 = vmatprep.subr.mxu0 0.0
  %473 = vmatpush2.msra.mxu0 0.0
  %474 = vmatprep.subr.mxu0 0.0
  %475 = vmatpush2.msra.mxu0 0.0
  %476 = vmatprep.subr.mxu0 0.0
  %477 = vmatpush2.msra.mxu0 0.0
  %478 = vmatprep.subr.mxu0 0.0
  %479 = vmatpush2.msra.mxu0 0.0
  %480 = vmatprep.subr.mxu0 0.0
  %481 = vmatpush2.msra.mxu0 0.0
  %482 = vmatprep.mubr.f32.mxu0 0.0
  %483 = vmatmul.mubr.f32.gmra.mxu0 %v410
  %v484 = vpop.f32.mrf.mxu0
  %v485 = vadd.f32 %v401, %v484
  %v486 = vpop.f32.mrf.mxu0
  %v487 = vadd.f32 %v405, %v486
  %488 = vdwg.mxu0
  %vm489 = vcmask 1041408
  %v490 = vsel %vm489, %v485, 0.0
  %v491 = vrot.slane %v490, 4
  %v492 = vadd.f32 %v490, %v491
  %v493 = vrot.slane %v492, 2
  %v494 = vadd.f32 %v492, %v493
  %v495 = vrot.slane %v494, 1
  %v496 = vadd.f32 %v494, %v495
  %vm497 = vcmask 254976
  %v498 = vsel %vm497, %v487, 0.0
  %v499 = vrot.slane %v498, 4
  %v500 = vadd.f32 %v498, %v499
  %v501 = vrot.slane %v500, 2
  %v502 = vadd.f32 %v500, %v501
  %v503 = vrot.slane %v502, 1
  %v504 = vadd.f32 %v502, %v503
  %v505 = vrcp.pop 2.0
  %v506 = vmul.f32 %v496, %v505
  %v507 = vmul.f32 %v504, %v505
  %v508 = vsub.f32 %v485, %v506
  %v509 = vsub.f32 %v487, %v507
  %v510 = vmul.f32 %v508, %v508
  %v511 = vmul.f32 %v509, %v509
  %v512 = vsel %vm489, %v510, 0.0
  %v513 = vrot.slane %v512, 4
  %v514 = vadd.f32 %v512, %v513
  %v515 = vrot.slane %v514, 2
  %v516 = vadd.f32 %v514, %v515
  %v517 = vrot.slane %v516, 1
  %v518 = vadd.f32 %v516, %v517
  %v519 = vsel %vm497, %v511, 0.0
  %v520 = vrot.slane %v519, 4
  %v521 = vadd.f32 %v519, %v520
  %v522 = vrot.slane %v521, 2
  %v523 = vadd.f32 %v521, %v522
  %v524 = vrot.slane %v523, 1
  %v525 = vadd.f32 %v523, %v524
  %v526 = vmul.f32 %v518, %v505
  %v527 = vmul.f32 %v525, %v505
  %v528 = vadd.f32 %v526, 1e-05
  %v529 = vadd.f32 %v527, 1e-05
  %v530 = vrsqrt.pop %v528
  %v531 = vrsqrt.pop %v529
  %v532 = vmul.f32 %v508, %v530
  %v533 = vmul.f32 %v509, %v531
  %s534 = scalar_lea.vmem %s5, 85
  %v535 = vld [vmem:[%s534] ss:$8 sm:$0x3]
  %v537 = vlaneseq
  %v538 = vshrl.u32 %v537, 7
  %v539 = vsub.s32 0, %v538
  %v540 = vrot.slane %v535, %v539
  %v541 = vlaneseq
  %v542 = vshrl.u32 %v541, 7
  %v543 = vsub.s32 1, %v542
  %v544 = vrot.slane %v535, %v543
  %v547 = vmul.f32 %v532, %v540
  %v548 = vmul.f32 %v533, %v544
  %s549 = scalar_lea.vmem %s5, 86
  %v550 = vld [vmem:[%s549] ss:$8 sm:$0x3]
  %v552 = vlaneseq
  %v553 = vshrl.u32 %v552, 7
  %v554 = vsub.s32 0, %v553
  %v555 = vrot.slane %v550, %v554
  %v556 = vlaneseq
  %v557 = vshrl.u32 %v556, 7
  %v558 = vsub.s32 1, %v557
  %v559 = vrot.slane %v550, %v558
  %v562 = vadd.f32 %v547, %v555
  %v563 = vadd.f32 %v548, %v559
  %v564 = vmax.f32 %v562, 0.0
  %565 = vst.msk [vmem:[#allocation3] sm:$0x3] %vm497, %v564
  %567 = vrot.lane.b32.xlu0 %v564, 96
  %v568 = vpop.permute.xlu0 %567
  %570 = vst.msk [vmem:[#allocation3 + $0x2] sm:$0x3] %vm497, %v568
  %571 = vrot.lane.b32.xlu0 %v564, 64
  %v572 = vpop.permute.xlu0 %571
  %574 = vst.msk [vmem:[#allocation3 + $0x4] sm:$0x3] %vm497, %v572
  %v575 = vld [vmem:[#allocation3] sm:$0x3f]
  %v576 = vld [vmem:[%s5 + $0x50] sm:$0x80]
  %v577 = vld [vmem:[%s5 + $0x60] sm:$0xff]
  %v578 = vld [vmem:[%s5 + $0x70] sm:$0xff]
  %v579 = vld [vmem:[%s5 + $0x80] sm:$0xff]
  %v580 = vld [vmem:[%s5 + $0x90] sm:$0x7f]
  %v581 = vld [vmem:[%s5 + $0x97] ss:$0 sm:$0xff]
  %vm587 = vcmask 1040384
  %v588 = vrot.slane %v576, 7
  %v589 = vrot.slane %v577, 7
  %v590 = vsel %vm587, %v588, %v589
  %v591 = vrot.slane %v578, 7
  %v592 = vsel %vm587, %v589, %v591
  %v593 = vrot.slane %v579, 7
  %v594 = vsel %vm587, %v591, %v593
  %v595 = vrot.slane %v580, 7
  %v596 = vsel %vm587, %v593, %v595
  %vm601 = vcmask 261120
  %v603 = vsel %vm601, %v575, 0
  %605 = vmatprep.subr.mxu0 0.0
  %606 = vmatpush1.msra.mxu0 0.0
  %607 = vmatprep.subr.mxu0 0.0
  %608 = vmatpush1.msra.mxu0 0.0
  %609 = vmatprep.subr.mxu0 0.0
  %610 = vmatpush1.msra.mxu0 0.0
  %611 = vmatprep.subr.mxu0 0.0
  %612 = vmatpush1.msra.mxu0 0.0
  %613 = vmatprep.subr.mxu0 0.0
  %614 = vmatpush1.msra.mxu0 0.0
  %615 = vmatprep.subr.mxu0 0.0
  %616 = vmatpush1.msra.mxu0 0.0
  %617 = vmatprep.subr.mxu0 0.0
  %618 = vmatpush1.msra.mxu0 0.0
  %619 = vmatprep.subr.mxu0 0.0
  %620 = vmatpush1.msra.mxu0 0.0
  %621 = vmatprep.subr.mxu0 0.0
  %622 = vmatpush1.msra.mxu0 0.0
  %623 = vmatprep.subr.mxu0 0.0
  %624 = vmatpush1.msra.mxu0 0.0
  %625 = vmatprep.subr.mxu0 0.0
  %626 = vmatpush1.msra.mxu0 0.0
  %627 = vmatprep.subr.mxu0 0.0
  %628 = vmatpush1.msra.mxu0 0.0
  %629 = vmatprep.subr.mxu0 0.0
  %630 = vmatpush1.msra.mxu0 %v596
  %631 = vmatprep.subr.mxu0 0.0
  %632 = vmatpush1.msra.mxu0 %v594
  %633 = vmatprep.subr.mxu0 0.0
  %634 = vmatpush1.msra.mxu0 %v592
  %635 = vmatprep.subr.mxu0 0.0
  %636 = vmatpush1.msra.mxu0 %v590
  %637 = vmatprep.subr.mxu0 0.0
  %638 = vmatpush2.msra.mxu0 0.0
  %639 = vmatprep.subr.mxu0 0.0
  %640 = vmatpush2.msra.mxu0 0.0
  %641 = vmatprep.subr.mxu0 0.0
  %642 = vmatpush2.msra.mxu0 0.0
  %643 = vmatprep.subr.mxu0 0.0
  %644 = vmatpush2.msra.mxu0 0.0
  %645 = vmatprep.subr.mxu0 0.0
  %646 = vmatpush2.msra.mxu0 0.0
  %647 = vmatprep.subr.mxu0 0.0
  %648 = vmatpush2.msra.mxu0 0.0
  %649 = vmatprep.subr.mxu0 0.0
  %650 = vmatpush2.msra.mxu0 0.0
  %651 = vmatprep.subr.mxu0 0.0
  %652 = vmatpush2.msra.mxu0 0.0
  %653 = vmatprep.subr.mxu0 0.0
  %654 = vmatpush2.msra.mxu0 0.0
  %655 = vmatprep.subr.mxu0 0.0
  %656 = vmatpush2.msra.mxu0 0.0
  %657 = vmatprep.subr.mxu0 0.0
  %658 = vmatpush2.msra.mxu0 0.0
  %659 = vmatprep.subr.mxu0 0.0
  %660 = vmatpush2.msra.mxu0 0.0
  %661 = vmatprep.subr.mxu0 0.0
  %662 = vmatpush2.msra.mxu0 0.0
  %663 = vmatprep.subr.mxu0 0.0
  %664 = vmatpush2.msra.mxu0 0.0
  %665 = vmatprep.subr.mxu0 0.0
  %666 = vmatpush2.msra.mxu0 0.0
  %667 = vmatprep.subr.mxu0 0.0
  %668 = vmatpush2.msra.mxu0 0.0
  %669 = vmatprep.mubr.f32.mxu0 0.0
  %670 = vmatmul.mubr.f32.gmra.mxu0 %v603
  %v671 = vpop.f32.mrf.mxu0
  %v672 = vadd.f32 %v581, %v671
  %v673 = vpop.f32.mrf.mxu0
  %674 = vdwg.mxu0
  %vm675 = vcmask 521216
  %v676 = vsel %vm675, %v672, 0.0
  %v677 = vrot.slane %v676, 4
  %v678 = vadd.f32 %v676, %v677
  %v679 = vrot.slane %v678, 2
  %v680 = vadd.f32 %v678, %v679
  %v681 = vrot.slane %v680, 1
  %v682 = vadd.f32 %v680, %v681
  %v683 = vrcp.pop 6.0
  %v684 = vmul.f32 %v682, %v683
  %v685 = vsub.f32 %v672, %v684
  %v686 = vmul.f32 %v685, %v685
  %v687 = vsel %vm675, %v686, 0.0
  %v688 = vrot.slane %v687, 4
  %v689 = vadd.f32 %v687, %v688
  %v690 = vrot.slane %v689, 2
  %v691 = vadd.f32 %v689, %v690
  %v692 = vrot.slane %v691, 1
  %v693 = vadd.f32 %v691, %v692
  %v694 = vmul.f32 %v693, %v683
  %v695 = vadd.f32 %v694, 1e-05
  %v696 = vrsqrt.pop %v695
  %v697 = vmul.f32 %v685, %v696
  %v698 = vld [vmem:[%s5 + $0xa0] ss:$0 sm:$0xff]
  %v699 = vmul.f32 %v697, %v698
  %v700 = vld [vmem:[%s5 + $0xa1] ss:$0 sm:$0xff]
  %v701 = vadd.f32 %v699, %v700
  %v702 = vld [vmem:[%s5 + $0xa0] sm:$0xc]
  %v703 = vld [vmem:[%s5 + $0xa0] sm:$0x70]
  %v706 = vunpack.c.l.s4 1966171168
  %v707 = vunpack.c.0.s8 %v706
  %v708 = vlaneseq
  %v709 = vshrl.u32 %v708, 7
  %v710 = vsub.s32 %v707, %v709
  %v711 = vrot.slane %v702, %v710
  %v712 = vcombine.high %v711, %v711
  %v714 = vunpack.c.l.s4 1966171168
  %v715 = vunpack.c.0.s8 %v714
  %v716 = vlaneseq
  %v717 = vshrl.u32 %v716, 7
  %v718 = vsub.s32 %v715, %v717
  %v719 = vrot.slane %v711, %v718
  %v721 = vunpack.c.l.s4 1966171168
  %v722 = vunpack.c.0.s8 %v721
  %v723 = vlaneseq
  %v724 = vshrl.u32 %v723, 7
  %v725 = vsub.s32 %v722, %v724
  %v726 = vrot.slane %v712, %v725
  %v727 = vcombine.high %v719, %v719
  %v728 = vcombine.high %v726, %v726
  %v729 = vlaneseq
  %v730 = vshrl.u32 %v729, 7
  %v731 = vsub.s32 0, %v730
  %v732 = vrot.slane %v727, %v731
  %v733 = vlaneseq
  %v734 = vshrl.u32 %v733, 7
  %v735 = vsub.s32 0, %v734
  %v736 = vrot.slane %v728, %v735
  %v739 = vmul.f32 %v732, %v703
  %v740 = vmul.f32 %v736, %v703
  %vm741 = vcmask 260100
  %v742 = vsel %vm741, %v739, 0.0
  %743 = vadd.xlane.f32.xlu0 %v742
  %v744 = vpop.xlane.xlu0 %743
  %v745 = vsel %vm741, %v740, 0.0
  %746 = vadd.xlane.f32.xlu0 %v745
  %v747 = vpop.xlane.xlu0 %746
  %v748 = vld [vmem:[#allocation4] sm:$0x3f]
  %v749 = vld [vmem:[#allocation4 + $0x8] sm:$0x3f]
  %v750 = vld [vmem:[%s6] sm:$0xff]
  %v751 = vld [vmem:[%s6 + $0x8] sm:$0xff]
  %v752 = vld [vmem:[%s6 + $0x10] sm:$0xff]
  %v753 = vld [vmem:[%s6 + $0x18] sm:$0xff]
  %v754 = vld [vmem:[%s6 + $0x20] sm:$0xff]
  %v755 = vld [vmem:[%s6 + $0x28] sm:$0xff]
  %v756 = vld [vmem:[%s6 + $0x30] sm:$0xff]
  %v757 = vld [vmem:[%s6 + $0x38] sm:$0xff]
  %v758 = vld [vmem:[%s6 + $0x40] sm:$0xff]
  %v759 = vld [vmem:[%s6 + $0x48] sm:$0xff]
  %v760 = vld [vmem:[%s6 + $0x50] sm:$0xff]
  %v761 = vld [vmem:[%s6 + $0x58] sm:$0xff]
  %v762 = vld [vmem:[%s6 + $0x60] sm:$0xff]
  %v763 = vld [vmem:[%s6 + $0x68] sm:$0xff]
  %v764 = vld [vmem:[%s6 + $0x70] sm:$0xff]
  %v765 = vld [vmem:[%s6 + $0x78] sm:$0xff]
  %v766 = vld [vmem:[%s6 + $0x80] sm:$0xff]
  %v767 = vld [vmem:[%s6 + $0x88] sm:$0xff]
  %v768 = vld [vmem:[%s6 + $0x90] sm:$0xff]
  %v769 = vld [vmem:[%s6 + $0x98] sm:$0xff]
  %v770 = vld [vmem:[%s6 + $0xa0] sm:$0xff]
  %v771 = vld [vmem:[%s6 + $0xa8] sm:$0xff]
  %v772 = vld [vmem:[%s6 + $0xb0] sm:$0xff]
  %v773 = vld [vmem:[%s6 + $0xb8] sm:$0xff]
  %v774 = vld [vmem:[%s6 + $0xc0] sm:$0xff]
  %v775 = vld [vmem:[%s6 + $0xc8] sm:$0xff]
  %v776 = vld [vmem:[%s6 + $0xd0] sm:$0xff]
  %v777 = vld [vmem:[%s6 + $0xd8] sm:$0xff]
  %v778 = vld [vmem:[%s6 + $0xe0] sm:$0xff]
  %v779 = vld [vmem:[%s6 + $0xe8] sm:$0xff]
  %v780 = vld [vmem:[%s6 + $0xf0] sm:$0xff]
  %v781 = vld [vmem:[%s6 + $0xf8] sm:$0xff]
  %782 = vmatprep.subr.mxu0 0.0
  %783 = vmatpush1.msra.mxu0 %v765
  %784 = vmatprep.subr.mxu0 0.0
  %785 = vmatpush1.msra.mxu0 %v764
  %786 = vmatprep.subr.mxu0 0.0
  %787 = vmatpush1.msra.mxu0 %v763
  %788 = vmatprep.subr.mxu0 0.0
  %789 = vmatpush1.msra.mxu0 %v762
  %790 = vmatprep.subr.mxu0 0.0
  %791 = vmatpush1.msra.mxu0 %v761
  %792 = vmatprep.subr.mxu0 0.0
  %793 = vmatpush1.msra.mxu0 %v760
  %794 = vmatprep.subr.mxu0 0.0
  %795 = vmatpush1.msra.mxu0 %v759
  %796 = vmatprep.subr.mxu0 0.0
  %797 = vmatpush1.msra.mxu0 %v758
  %798 = vmatprep.subr.mxu0 0.0
  %799 = vmatpush1.msra.mxu0 %v757
  %800 = vmatprep.subr.mxu0 0.0
  %801 = vmatpush1.msra.mxu0 %v756
  %802 = vmatprep.subr.mxu0 0.0
  %803 = vmatpush1.msra.mxu0 %v755
  %804 = vmatprep.subr.mxu0 0.0
  %805 = vmatpush1.msra.mxu0 %v754
  %806 = vmatprep.subr.mxu0 0.0
  %807 = vmatpush1.msra.mxu0 %v753
  %808 = vmatprep.subr.mxu0 0.0
  %809 = vmatpush1.msra.mxu0 %v752
  %810 = vmatprep.subr.mxu0 0.0
  %811 = vmatpush1.msra.mxu0 %v751
  %812 = vmatprep.subr.mxu0 0.0
  %813 = vmatpush1.msra.mxu0 %v750
  %814 = vmatprep.subr.mxu0 0.0
  %815 = vmatpush2.msra.mxu0 %v781
  %816 = vmatprep.subr.mxu0 0.0
  %817 = vmatpush2.msra.mxu0 %v780
  %818 = vmatprep.subr.mxu0 0.0
  %819 = vmatpush2.msra.mxu0 %v779
  %820 = vmatprep.subr.mxu0 0.0
  %821 = vmatpush2.msra.mxu0 %v778
  %822 = vmatprep.subr.mxu0 0.0
  %823 = vmatpush2.msra.mxu0 %v777
  %824 = vmatprep.subr.mxu0 0.0
  %825 = vmatpush2.msra.mxu0 %v776
  %826 = vmatprep.subr.mxu0 0.0
  %827 = vmatpush2.msra.mxu0 %v775
  %828 = vmatprep.subr.mxu0 0.0
  %829 = vmatpush2.msra.mxu0 %v774
  %830 = vmatprep.subr.mxu0 0.0
  %831 = vmatpush2.msra.mxu0 %v773
  %832 = vmatprep.subr.mxu0 0.0
  %833 = vmatpush2.msra.mxu0 %v772
  %834 = vmatprep.subr.mxu0 0.0
  %835 = vmatpush2.msra.mxu0 %v771
  %836 = vmatprep.subr.mxu0 0.0
  %837 = vmatpush2.msra.mxu0 %v770
  %838 = vmatprep.subr.mxu0 0.0
  %839 = vmatpush2.msra.mxu0 %v769
  %840 = vmatprep.subr.mxu0 0.0
  %841 = vmatpush2.msra.mxu0 %v768
  %842 = vmatprep.subr.mxu0 0.0
  %843 = vmatpush2.msra.mxu0 %v767
  %844 = vmatprep.subr.mxu0 0.0
  %845 = vmatpush2.msra.mxu0 %v766
  %846 = vmatprep.mubr.f32.mxu0 %v749
  %847 = vmatmul.mubr.f32.gmra.mxu0 %v748
  %v848 = vpop.f32.mrf.mxu0
  %v849 = vadd.f32 0.0, %v848
  %v850 = vpop.f32.mrf.mxu0
  %851 = vdwg.mxu0
  %v852 = vmul.f32 %v849, %v849
  %v853 = vsel %vm675, %v852, 0.0
  %854 = vadd.xlane.f32.xlu0 %v853
  %v855 = vpop.xlane.xlu0 %854
  %v856 = vrsqrt.pop %v855
  %v857 = vmul.f32 %v855, %v856
  %vm858 = vcmp.eq.f32.partialorder %v855, inf
  %v859 = vsel %vm858, %v855, %v857
  %vm860 = vcmp.eq.f32.partialorder %v855, 0.0
  %v861 = vand.u32 %v855, 2147483648
  %v862 = vsel %vm860, %v861, %v859
  %v863 = vmax.f32 %v862, 1e-12
  %v864 = vrcp.pop %v863
  %v865 = vmul.f32 %v849, %v864
  %v866 = vmul.f32 %v748, %v748
  %v867 = vmul.f32 %v749, %v749
  %vm868 = vcmask 1045504
  %v869 = vsel %vm868, %v866, 0.0
  %v870 = vsel %vm868, %v867, 0.0
  %v871 = vadd.f32 %v869, %v870
  %872 = vadd.xlane.f32.xlu0 %v871
  %v873 = vpop.xlane.xlu0 %872
  %v874 = vrsqrt.pop %v873
  %v875 = vmul.f32 %v873, %v874
  %vm876 = vcmp.eq.f32.partialorder %v873, inf
  %v877 = vsel %vm876, %v873, %v875
  %vm878 = vcmp.eq.f32.partialorder %v873, 0.0
  %v879 = vand.u32 %v873, 2147483648
  %v880 = vsel %vm878, %v879, %v877
  %v881 = vmax.f32 %v880, 1e-12
  %v882 = vrcp.pop %v881
  %v883 = vmul.f32 %v748, %v882
  %v884 = vmul.f32 %v749, %v882
  %v885 = vmul.f32 %v290, %v290
  %v886 = vmul.f32 %v291, %v291
  %v889 = vsel %vm57, %v886, %v885
  %vm891 = vcmask 517120
  %v892 = vsel %vm891, %v889, 0.0
  %893 = vadd.xlane.f32.xlu0 %v892
  %v894 = vpop.xlane.xlu0 %893
  %v895 = vrsqrt.pop %v894
  %v896 = vmul.f32 %v894, %v895
  %vm897 = vcmp.eq.f32.partialorder %v894, inf
  %v898 = vsel %vm897, %v894, %v896
  %vm899 = vcmp.eq.f32.partialorder %v894, 0.0
  %v900 = vand.u32 %v894, 2147483648
  %v901 = vsel %vm899, %v900, %v898
  %v902 = vmax.f32 %v901, 1e-12
  %v904 = vrot.slane %v902, 1
  %v907 = vrcp.pop %v902
  %v908 = vmul.f32 %v290, %v907
  %v909 = vrcp.pop %v904
  %v910 = vmul.f32 %v291, %v909
  %912 = vrot.lane.b32.xlu0 %v562, 32
  %v913 = vpop.permute.xlu0 %912
  %v915 = vmul.f32 %v701, %v913
  %v916 = vsel %vm497, %v915, 0.0
  %917 = vadd.xlane.f32.xlu0 %v916
  %v918 = vpop.xlane.xlu0 %917
  %v919 = vlaneseq
  %v920 = vshrl.u32 %v919, 7
  %v921 = vsub.s32 4, %v920
  %v922 = vrot.slane %v744, %v921
  %v923 = vadd.f32 %v918, %v922
  %v924 = vmul.f32 %v923, 0.17677669
  %v927 = vrot.slane %v910, 7
  %v928 = vsel %vm57, %v927, %v908
  %v930 = vsub.f32 %v865, %v928
  %v931 = vmul.f32 %v930, %v930
  %v932 = vsel %vm891, %v931, 0.0
  %933 = vadd.xlane.f32.xlu0 %v932
  %v934 = vpop.xlane.xlu0 %933
  %v935 = vrcp.pop 64.0
  %v936 = vmul.f32 %v934, %v935
  %v937 = vrot.slane %v562, 6
  %938 = vrot.lane.b32.xlu0 %v937, 32
  %v939 = vpop.permute.xlu0 %938
  %v941 = vmul.f32 %v701, %v939
  %vm942 = vcmask 257026
  %v943 = vsel %vm942, %v941, 0.0
  %944 = vadd.xlane.f32.xlu0 %v943
  %v945 = vpop.xlane.xlu0 %944
  %v946 = vlaneseq
  %v947 = vshrl.u32 %v946, 7
  %v948 = vsub.s32 5, %v947
  %v949 = vrot.slane %v744, %v948
  %v950 = vadd.f32 %v945, %v949
  %v951 = vmul.f32 %v950, 0.17677669
  %v952 = vrot.slane %v908, 6
  %v953 = vrot.slane %v910, 5
  %v954 = vsel %vm175, %v953, %v952
  %v956 = vsub.f32 %v865, %v954
  %v957 = vmul.f32 %v956, %v956
  %vm958 = vcmask 519170
  %v959 = vsel %vm958, %v957, 0.0
  %960 = vadd.xlane.f32.xlu0 %v959
  %v961 = vpop.xlane.xlu0 %960
  %v962 = vmul.f32 %v961, %v935
  %v963 = vrot.slane %v562, 4
  %964 = vrot.lane.b32.xlu0 %v963, 32
  %v965 = vpop.permute.xlu0 %964
  %v967 = vmul.f32 %v701, %v965
  %vm968 = vcmask 259076
  %v969 = vsel %vm968, %v967, 0.0
  %970 = vadd.xlane.f32.xlu0 %v969
  %v971 = vpop.xlane.xlu0 %970
  %v972 = vlaneseq
  %v973 = vshrl.u32 %v972, 7
  %v974 = vsub.s32 6, %v973
  %v975 = vrot.slane %v744, %v974
  %v976 = vadd.f32 %v971, %v975
  %v977 = vmul.f32 %v976, 0.17677669
  %v978 = vrot.slane %v908, 4
  %v979 = vrot.slane %v910, 3
  %v980 = vsel %vm243, %v979, %v978
  %v982 = vsub.f32 %v865, %v980
  %v983 = vmul.f32 %v982, %v982
  %vm984 = vcmask 521220
  %v985 = vsel %vm984, %v983, 0.0
  %986 = vadd.xlane.f32.xlu0 %v985
  %v987 = vpop.xlane.xlu0 %986
  %v988 = vmul.f32 %v987, %v935
  %v990 = vrot.slane %v951, 2
  %v992 = vmax.f32 %v924, %v990
  %v994 = vrot.slane %v977, 4
  %v996 = vmax.f32 %v992, %v994
  %v997 = vsub.f32 %v924, %v996
  %v998 = vmul.f32 %v997, 1.442695
  %v999 = vpow.pop %v998
  %v1001 = vrot.slane %v996, 6
  %v1003 = vsub.f32 %v951, %v1001
  %v1004 = vmul.f32 %v1003, 1.442695
  %v1005 = vpow.pop %v1004
  %v1006 = vrot.slane %v996, 4
  %v1008 = vsub.f32 %v977, %v1006
  %v1009 = vmul.f32 %v1008, 1.442695
  %v1010 = vpow.pop %v1009
  %v1011 = vmul.f32 %v936, %v999
  %v1013 = vrot.slane %v1005, 2
  %v1015 = vadd.f32 %v999, %v1013
  %v1016 = vmul.f32 %v962, %v1005
  %v1018 = vrot.slane %v1016, 2
  %v1020 = vadd.f32 %v1011, %v1018
  %v1022 = vrot.slane %v1010, 4
  %v1024 = vadd.f32 %v1015, %v1022
  %v1025 = vmul.f32 %v988, %v1010
  %v1027 = vrot.slane %v1025, 4
  %v1029 = vadd.f32 %v1020, %v1027
  %v1030 = vrcp.pop %v1024
  %v1031 = vmul.f32 %v1029, %v1030
  %vm1032 = vcmask 1024
  %v1033 = vsel %vm1032, %v1031, 0.0
  %v1034 = vrot.slane %v1033, 4
  %v1035 = vadd.f32 %v1033, %v1034
  %v1036 = vrot.slane %v1035, 2
  %v1037 = vadd.f32 %v1035, %v1036
  %v1038 = vrot.slane %v1037, 1
  %v1039 = vadd.f32 %v1037, %v1038
  %v1040 = vmul.f32 %v1039, 0.5
  %vm1041 = vcmp.eq.s32.totalorder %v48, 0
  %1043 = vset.pattern.permute.xlu0 0
  %1044 = vperm.xlu0 %1043, %v1040
  %v1045 = vpop.permute.xlu0 %1044
  %v1047 = vsel %vm1041, %v1045, 0.0
  %v1048 = vadd.f32 %v1047, 0.0
  %v1049 = vmul.f32 %v378, %v378
  %v1050 = vmul.f32 %v379, %v379
  %v1051 = vmul.f32 %v380, %v380
  %v1052 = vmul.f32 %v381, %v381
  %v1057 = vsel %vm57, %v1051, %v1049
  %v1058 = vsel %vm57, %v1052, %v1050
  %v1061 = vsel %vm489, %v1057, 0.0
  %v1062 = vsel %vm489, %v1058, 0.0
  %v1063 = vadd.f32 %v1061, %v1062
  %1064 = vadd.xlane.f32.xlu0 %v1063
  %v1065 = vpop.xlane.xlu0 %1064
  %v1066 = vrsqrt.pop %v1065
  %v1067 = vmul.f32 %v1065, %v1066
  %vm1068 = vcmp.eq.f32.partialorder %v1065, inf
  %v1069 = vsel %vm1068, %v1065, %v1067
  %vm1070 = vcmp.eq.f32.partialorder %v1065, 0.0
  %v1071 = vand.u32 %v1065, 2147483648
  %v1072 = vsel %vm1070, %v1071, %v1069
  %v1073 = vmax.f32 %v1072, 1e-12
  %v1075 = vrot.slane %v1073, 1
  %v1078 = vrcp.pop %v1073
  %v1079 = vmul.f32 %v378, %v1078
  %v1080 = vmul.f32 %v379, %v1078
  %v1081 = vrcp.pop %v1075
  %v1082 = vmul.f32 %v380, %v1081
  %v1083 = vmul.f32 %v381, %v1081
  %1085 = vrot.lane.b32.xlu0 %v563, 32
  %v1086 = vpop.permute.xlu0 %1085
  %v1088 = vmul.f32 %v701, %v1086
  %1090 = vrot.lane.b32.xlu0 %v1088, 96
  %v1091 = vpop.permute.xlu0 %1090
  %v1093 = vsel %vm497, %v1091, 0.0
  %1094 = vadd.xlane.f32.xlu0 %v1093
  %v1095 = vpop.xlane.xlu0 %1094
  %v1096 = vlaneseq
  %v1097 = vshrl.u32 %v1096, 7
  %v1098 = vsub.s32 4, %v1097
  %v1099 = vrot.slane %v747, %v1098
  %v1100 = vadd.f32 %v1095, %v1099
  %v1101 = vmul.f32 %v1100, 0.17677669
  %v1106 = vrot.slane %v1082, 7
  %v1107 = vsel %vm57, %v1106, %v1079
  %v1108 = vrot.slane %v1083, 7
  %v1109 = vsel %vm57, %v1108, %v1080
  %v1112 = vsub.f32 %v883, %v1107
  %v1113 = vsub.f32 %v884, %v1109
  %v1114 = vmul.f32 %v1112, %v1112
  %v1115 = vmul.f32 %v1113, %v1113
  %v1116 = vsel %vm489, %v1114, 0.0
  %v1117 = vsel %vm489, %v1115, 0.0
  %v1118 = vadd.f32 %v1116, %v1117
  %1119 = vadd.xlane.f32.xlu0 %v1118
  %v1120 = vpop.xlane.xlu0 %1119
  %v1121 = vrcp.pop 256.0
  %v1122 = vmul.f32 %v1120, %v1121
  %v1123 = vrot.slane %v563, 6
  %1124 = vrot.lane.b32.xlu0 %v1123, 32
  %v1125 = vpop.permute.xlu0 %1124
  %v1127 = vmul.f32 %v701, %v1125
  %1129 = vrot.lane.b32.xlu0 %v1127, 96
  %v1130 = vpop.permute.xlu0 %1129
  %v1132 = vsel %vm942, %v1130, 0.0
  %1133 = vadd.xlane.f32.xlu0 %v1132
  %v1134 = vpop.xlane.xlu0 %1133
  %v1135 = vlaneseq
  %v1136 = vshrl.u32 %v1135, 7
  %v1137 = vsub.s32 5, %v1136
  %v1138 = vrot.slane %v747, %v1137
  %v1139 = vadd.f32 %v1134, %v1138
  %v1140 = vmul.f32 %v1139, 0.17677669
  %v1141 = vrot.slane %v1079, 6
  %v1142 = vrot.slane %v1082, 5
  %v1143 = vsel %vm175, %v1142, %v1141
  %v1144 = vrot.slane %v1080, 6
  %v1145 = vrot.slane %v1083, 5
  %v1146 = vsel %vm175, %v1145, %v1144
  %v1149 = vsub.f32 %v883, %v1143
  %v1150 = vsub.f32 %v884, %v1146
  %v1151 = vmul.f32 %v1149, %v1149
  %v1152 = vmul.f32 %v1150, %v1150
  %vm1153 = vcmask 1043458
  %v1154 = vsel %vm1153, %v1151, 0.0
  %v1155 = vsel %vm1153, %v1152, 0.0
  %v1156 = vadd.f32 %v1154, %v1155
  %1157 = vadd.xlane.f32.xlu0 %v1156
  %v1158 = vpop.xlane.xlu0 %1157
  %v1159 = vmul.f32 %v1158, %v1121
  %v1160 = vrot.slane %v563, 4
  %1161 = vrot.lane.b32.xlu0 %v1160, 32
  %v1162 = vpop.permute.xlu0 %1161
  %v1164 = vmul.f32 %v701, %v1162
  %1166 = vrot.lane.b32.xlu0 %v1164, 96
  %v1167 = vpop.permute.xlu0 %1166
  %v1169 = vsel %vm968, %v1167, 0.0
  %1170 = vadd.xlane.f32.xlu0 %v1169
  %v1171 = vpop.xlane.xlu0 %1170
  %v1172 = vlaneseq
  %v1173 = vshrl.u32 %v1172, 7
  %v1174 = vsub.s32 6, %v1173
  %v1175 = vrot.slane %v747, %v1174
  %v1176 = vadd.f32 %v1171, %v1175
  %v1177 = vmul.f32 %v1176, 0.17677669
  %v1178 = vrot.slane %v1079, 4
  %v1179 = vrot.slane %v1082, 3
  %v1180 = vsel %vm243, %v1179, %v1178
  %v1181 = vrot.slane %v1080, 4
  %v1182 = vrot.slane %v1083, 3
  %v1183 = vsel %vm243, %v1182, %v1181
  %v1186 = vsub.f32 %v883, %v1180
  %v1187 = vsub.f32 %v884, %v1183
  %v1188 = vmul.f32 %v1186, %v1186
  %v1189 = vmul.f32 %v1187, %v1187
  %vm1190 = vcmask 1045508
  %v1191 = vsel %vm1190, %v1188, 0.0
  %v1192 = vsel %vm1190, %v1189, 0.0
  %v1193 = vadd.f32 %v1191, %v1192
  %1194 = vadd.xlane.f32.xlu0 %v1193
  %v1195 = vpop.xlane.xlu0 %1194
  %v1196 = vmul.f32 %v1195, %v1121
  %v1198 = vrot.slane %v1140, 2
  %v1200 = vmax.f32 %v1101, %v1198
  %v1202 = vrot.slane %v1177, 4
  %v1204 = vmax.f32 %v1200, %v1202
  %v1205 = vsub.f32 %v1101, %v1204
  %v1206 = vmul.f32 %v1205, 1.442695
  %v1207 = vpow.pop %v1206
  %v1209 = vrot.slane %v1204, 6
  %v1211 = vsub.f32 %v1140, %v1209
  %v1212 = vmul.f32 %v1211, 1.442695
  %v1213 = vpow.pop %v1212
  %v1214 = vrot.slane %v1204, 4
  %v1216 = vsub.f32 %v1177, %v1214
  %v1217 = vmul.f32 %v1216, 1.442695
  %v1218 = vpow.pop %v1217
  %v1219 = vmul.f32 %v1122, %v1207
  %v1221 = vrot.slane %v1213, 2
  %v1223 = vadd.f32 %v1207, %v1221
  %v1224 = vmul.f32 %v1159, %v1213
  %v1226 = vrot.slane %v1224, 2
  %v1228 = vadd.f32 %v1219, %v1226
  %v1230 = vrot.slane %v1218, 4
  %v1232 = vadd.f32 %v1223, %v1230
  %v1233 = vmul.f32 %v1196, %v1218
  %v1235 = vrot.slane %v1233, 4
  %v1237 = vadd.f32 %v1228, %v1235
  %v1238 = vrcp.pop %v1232
  %v1239 = vmul.f32 %v1237, %v1238
  %v1240 = vsel %vm1032, %v1239, 0.0
  %v1241 = vrot.slane %v1240, 4
  %v1242 = vadd.f32 %v1240, %v1241
  %v1243 = vrot.slane %v1242, 2
  %v1244 = vadd.f32 %v1242, %v1243
  %v1245 = vrot.slane %v1244, 1
  %v1246 = vadd.f32 %v1244, %v1245
  %v1247 = vmul.f32 %v1246, 0.5
  %vm1248 = vcmp.eq.s32.totalorder %v48, 1
  %1250 = vset.pattern.permute.xlu0 0
  %1251 = vperm.xlu0 %1250, %v1247
  %v1252 = vpop.permute.xlu0 %1251
  %v1254 = vsel %vm1248, %v1252, 0.0
  %v1255 = vadd.f32 %v1048, %v1254
  %1256 = vst [vmem:[%s7] sm:$0x1] %v1255
  // Predicated region
  $region30: #{attention_forward.1} parent=0 // pred_check
    _
  $region31: #{attention_forward.1} parent=0 // pred_check_branch
    %1258 = sbr.rel (0) target = $region33
  $region32: #{attention_forward.1} parent=0 // pred_region
    _
  $region33: #{attention_forward.1} parent=0 // pred_fallthru
    _
  // Predicated region
  $region34: #{attention_forward.1} parent=0 // pred_check
    _
  $region35: #{attention_forward.1} parent=0 // pred_check_branch
    %1260 = sbr.rel (0) target = $region37
  $region36: #{attention_forward.1} parent=0 // pred_region
    _
  $region37: #{attention_forward.1} parent=0 // pred_fallthru
    _

</llo_original>
